<compile_context>
chip_gen: v7x
topology: tpu7x:2x2x1
jax: 0.10.0
libtpu: 0.0.40
codegen_flags: <defaults>
</compile_context>

<pallas_src>
import math
from functools import partial

import jax
import jax.numpy as jnp
from jax import lax
from jax.experimental import pallas as pl
from jax.experimental.pallas import tpu as pltpu

_INV_SQRT2 = 1.0 / math.sqrt(2.0)
_C_PAD = 8  # layer-1 contraction dim padded to 8 (aligned block / MXU K)


def _default_gelu_mode():
    # Packed-bf16 VALU GELU on v6e/v7x (bf16 VPU); exact f32 erf elsewhere
    # (v5e and older have no bf16 VPU, so bf16 elementwise would be emulated).
    try:
        kind = jax.devices()[0].device_kind.lower()
    except Exception:
        return "erf"
    return "erf_bf16" if ("v6" in kind or "v7" in kind) else "erf"


def _make_gelu(mode):
    if mode == "tanh":
        # Opt-in tanh approximation: runs on the (otherwise idle) EUP slot and
        # cuts the binding VALU work ~2-3x on all generations. Deviates from
        # PyTorch's exact erf GELU by ~1e-3 relative at |x| ~ 2-3.
        return lambda x: jax.nn.gelu(x, approximate=True)
    if mode == "erf_bf16":
        # bf16 VALU path for v6e/v7x; the bf16 result feeds the next bf16
        # matmul directly (no extra cast).
        def gelu_bf16(x):
            xb = x.astype(jnp.bfloat16)
            return 0.5 * xb * (1.0 + lax.erf(xb * _INV_SQRT2))
        return gelu_bf16
    # Exact erf GELU in f32 — matches PyTorch nn.GELU() default.
    return lambda x: 0.5 * x * (1.0 + lax.erf(x * _INV_SQRT2))


def _mlp_tile_max(x_cn, w1, b1, w2, b2, w3, b3, w4, b4, gelu):
    """x_cn: (C_PAD, TN) f32 lane-dense points -> (1, 256) f32 max over tile."""
    # Small XLU transpose (8 * TN f32) so every layer is a plain row-major MXU
    # matmul. Layer 1 stays f32 (tiny K=8); layers 2-4 use bf16 MXU operands
    # with f32 accumulation; bias adds stay f32.
    x = jnp.transpose(x_cn)                                        # (TN, 8) f32
    h = gelu(jnp.dot(x, w1[...],
                     preferred_element_type=jnp.float32) + b1[...])       # (TN, 64)
    h = gelu(jnp.dot(h.astype(jnp.bfloat16), w2[...],
                     preferred_element_type=jnp.float32) + b2[...])       # (TN, 64)
    h = gelu(jnp.dot(h.astype(jnp.bfloat16), w3[...],
                     preferred_element_type=jnp.float32) + b3[...])       # (TN, 128)
    h = (jnp.dot(h.astype(jnp.bfloat16), w4[...],
                 preferred_element_type=jnp.float32) + b4[...])           # (TN, 256)
    return jnp.max(h, axis=0, keepdims=True)                              # (1, 256)


def _kernel_single_tile(x_ref, w1, b1, w2, b2, w3, b3, w4, b4, o_ref, *, gelu):
    """grid = (B,): the whole point cloud of one batch element fits one tile."""
    tile_max = _mlp_tile_max(x_ref[0], w1, b1, w2, b2, w3, b3, w4, b4, gelu)
    o_ref[0] = tile_max.astype(o_ref.dtype)


def _kernel_multi_tile(x_ref, w1, b1, w2, b2, w3, b3, w4, b4, o_ref, *, gelu):
    """grid = (B, N // tile_n): running max accumulated in the resident o_ref."""
    j = pl.program_id(1)
    tile_max = _mlp_tile_max(x_ref[0], w1, b1, w2, b2, w3, b3, w4, b4, gelu)

    @pl.when(j == 0)
    def _():
        o_ref[0] = jnp.full((1, o_ref.shape[-1]), -jnp.inf, o_ref.dtype)

    o_ref[0] = jnp.maximum(o_ref[0], tile_max.astype(o_ref.dtype))


def pointnet_large_half(x, params, *, tile_n=2048, gelu_mode=None):
    """x: [B, N, C_in] float32 -> [B, 256] float32."""
    B, N, C_in = x.shape
    assert C_in <= _C_PAD, "point_channel must be <= 8"
    (w1, b1), (w2, b2), (w3, b3), (w4, b4) = params
    out_dim = w4.shape[1]

    if gelu_mode is None:
        gelu_mode = _default_gelu_mode()
    gelu = _make_gelu(gelu_mode)

    # Lane-dense point layout: [B, N, C] -> [B, C_PAD, N]. The x block then
    # DMAs as 8 wide rows per tile instead of tile_n tiny (12 B) strided rows,
    # and occupies 8*tile_n*4 B of VMEM instead of tile_n*128*4 B.
    x_t = jnp.swapaxes(x, 1, 2).astype(jnp.float32)                # [B, C, N]
    x_t = jnp.pad(x_t, ((0, 0), (0, _C_PAD - C_in), (0, 0)))       # [B, 8, N]

    # Layer 1 stays f32 (K is tiny); layers 2-4 feed the MXU in bf16.
    w1p = jnp.pad(w1.astype(jnp.float32), ((0, _C_PAD - C_in), (0, 0)))
    w2b = w2.astype(jnp.bfloat16)
    w3b = w3.astype(jnp.bfloat16)
    w4b = w4.astype(jnp.bfloat16)
    b1f, b2f, b3f, b4f = (jnp.reshape(b.astype(jnp.float32), (1, -1))
                          for b in (b1, b2, b3, b4))
    weights = (w1p, b1f, w2b, b2f, w3b, b3f, w4b, b4f)

    def resident(a):
        nd = a.ndim
        return pl.BlockSpec(a.shape, lambda *_, nd=nd: (0,) * nd)

    weight_specs = [resident(a) for a in weights]
    # Output kept 3-D (B, 1, 256) so the block's trailing dims are (1, 256):
    # lane-dense, fully aligned. Squeezed in the wrapper.
    out_shape = jax.ShapeDtypeStruct((B, 1, out_dim), jnp.float32)

    if N <= tile_n:
        # Single point tile per batch element: no reduction axis, no
        # accumulator, output written once. Batch axis is fully parallel
        # (shards across the two v7x TensorCores when B >= 2).
        out3 = pl.pallas_call(
            partial(_kernel_single_tile, gelu=gelu),
            out_shape=out_shape,
            grid_spec=pltpu.PrefetchScalarGridSpec(
                num_scalar_prefetch=0,
                grid=(B,),
                in_specs=[pl.BlockSpec((1, _C_PAD, N), lambda b: (b, 0, 0))]
                         + weight_specs,
                out_specs=pl.BlockSpec((1, 1, out_dim), lambda b: (b, 0, 0)),
            ),
            compiler_params=pltpu.CompilerParams(
                dimension_semantics=("parallel",)),
        )(x_t, *weights)
    else:
        # Multi-tile path: reduction over point tiles (axis last, "arbitrary").
        # TODO(synk): ragged N would need -inf masking of padded point columns;
        # a leading size-2 "parallel" split of this axis would recover the
        # second v7x TensorCore when B == 1.
        assert tile_n % 128 == 0, "tile_n must be a multiple of 128 (lane dim)"
        assert N % tile_n == 0, "N must be a multiple of tile_n when N > tile_n"
        out3 = pl.pallas_call(
            partial(_kernel_multi_tile, gelu=gelu),
            out_shape=out_shape,
            grid_spec=pltpu.PrefetchScalarGridSpec(
                num_scalar_prefetch=0,
                grid=(B, N // tile_n),
                in_specs=[pl.BlockSpec((1, _C_PAD, tile_n),
                                       lambda b, j: (b, 0, j))]
                         + weight_specs,
                out_specs=pl.BlockSpec((1, 1, out_dim), lambda b, j: (b, 0, 0)),
            ),
            compiler_params=pltpu.CompilerParams(
                dimension_semantics=("parallel", "arbitrary")),
        )(x_t, *weights)

    return out3[:, 0, :]


def init_params(key, point_channel=3):
    """Deterministic synthetic weights matching the module's __init__ shapes."""
    dims = [point_channel, 64, 64, 128, 256]
    params = []
    for i in range(4):
        key, kw = jax.random.split(key)
        w = 0.02 * jax.random.normal(kw, (dims[i], dims[i + 1]), jnp.float32)
        b = jnp.zeros((1, dims[i + 1]), jnp.float32)
        params.append((w, b))
    return params


def reference(x, params):
    h = x
    for i, (w, b) in enumerate(params):
        h = h @ w + b
        if i < 3:
            h = 0.5 * h * (1.0 + lax.erf(h * _INV_SQRT2))
    return jnp.max(h, axis=1)


if __name__ == "__main__":
    key = jax.random.PRNGKey(0)
    k_x, k_p = jax.random.split(key)

    B, N, C = 2, 256, 3
    x = jax.random.normal(k_x, (B, N, C), jnp.float32)
    params = init_params(k_p, point_channel=C)
    ref = reference(x, params)

    # Primary path: auto GELU mode (bf16 erf on v6e/v7x, exact f32 elsewhere),
    # whole point cloud in one tile, grid = (B,).
    out = jax.block_until_ready(pointnet_large_half(x, params))
    assert out.shape == (B, 256), out.shape
    assert jnp.allclose(out, ref, atol=3e-5, rtol=5e-2), (
        float(jnp.max(jnp.abs(out - ref))))

    # Exact-erf f32 GELU path (bit-faithful to PyTorch nn.GELU()).
    out_exact = jax.block_until_ready(
        pointnet_large_half(x, params, gelu_mode="erf"))
    assert jnp.allclose(out_exact, ref, atol=2e-5, rtol=2e-2), (
        float(jnp.max(jnp.abs(out_exact - ref))))

    # Multi-tile path: reduction axis with the running max accumulated in the
    # resident output block.
    out_mt = jax.block_until_ready(
        pointnet_large_half(x, params, tile_n=128, gelu_mode="erf"))
    assert jnp.allclose(out_mt, ref, atol=2e-5, rtol=2e-2), (
        float(jnp.max(jnp.abs(out_mt - ref))))

    print("KERNEL_OK")
</pallas_src>

<mosaic_0001>
module attributes {stable_mosaic.version = 11 : i64} {
  func.func @_kernel_single_tile(%arg0: i32, %arg1: memref<1x8x256xf32, #tpu.memory_space<vmem>>, %arg2: memref<8x64xf32, #tpu.memory_space<vmem>>, %arg3: memref<1x64xf32, #tpu.memory_space<vmem>>, %arg4: memref<64x64xbf16, #tpu.memory_space<vmem>>, %arg5: memref<1x64xf32, #tpu.memory_space<vmem>>, %arg6: memref<64x128xbf16, #tpu.memory_space<vmem>>, %arg7: memref<1x128xf32, #tpu.memory_space<vmem>>, %arg8: memref<128x256xbf16, #tpu.memory_space<vmem>>, %arg9: memref<1x256xf32, #tpu.memory_space<vmem>>, %arg10: memref<1x1x256xf32, #tpu.memory_space<vmem>>) attributes {dimension_semantics = [#tpu.dimension_semantics<parallel>], iteration_bounds = array<i64: 2>, scalar_prefetch = 0 : i64, scratch_operands = 0 : i64, tpu.core_type = #tpu.core_type<tc>, window_params = [{transform_indices = @transform_0, window_bounds = array<i64: 1, 8, 256>}, {pipeline_mode = #tpu.pipeline_mode<synchronous>, transform_indices = @transform_1, window_bounds = array<i64: 8, 64>}, {pipeline_mode = #tpu.pipeline_mode<synchronous>, transform_indices = @transform_2, window_bounds = array<i64: 1, 64>}, {pipeline_mode = #tpu.pipeline_mode<synchronous>, transform_indices = @transform_3, window_bounds = array<i64: 64, 64>}, {pipeline_mode = #tpu.pipeline_mode<synchronous>, transform_indices = @transform_4, window_bounds = array<i64: 1, 64>}, {pipeline_mode = #tpu.pipeline_mode<synchronous>, transform_indices = @transform_5, window_bounds = array<i64: 64, 128>}, {pipeline_mode = #tpu.pipeline_mode<synchronous>, transform_indices = @transform_6, window_bounds = array<i64: 1, 128>}, {pipeline_mode = #tpu.pipeline_mode<synchronous>, transform_indices = @transform_7, window_bounds = array<i64: 128, 256>}, {pipeline_mode = #tpu.pipeline_mode<synchronous>, transform_indices = @transform_8, window_bounds = array<i64: 1, 256>}, {transform_indices = @transform_9, window_bounds = array<i64: 1, 1, 256>}]} {
    %c0 = arith.constant 0 : index
    %c0_0 = arith.constant 0 : index
    %c0_1 = arith.constant 0 : index
    %0 = vector.load %arg1[%c0, %c0_0, %c0_1] : memref<1x8x256xf32, #tpu.memory_space<vmem>>, vector<1x8x256xf32>
    %1 = vector.shape_cast %0 : vector<1x8x256xf32> to vector<8x256xf32>
    %2 = tpu.transpose %1, [1, 0] : vector<8x256xf32> -> vector<256x8xf32>
    %c0_2 = arith.constant 0 : index
    %c0_3 = arith.constant 0 : index
    %3 = vector.load %arg2[%c0_2, %c0_3] : memref<8x64xf32, #tpu.memory_space<vmem>>, vector<8x64xf32>
    %cst = arith.constant dense<0.000000e+00> : vector<256x64xf32>
    %4 = tpu.matmul %2, %3, %cst {dimension_numbers = #tpu.dot_dimension_numbers<[1], [0], [0], [1], [0, 0, 1, 1], [], []>} : vector<256x8xf32>, vector<8x64xf32>, vector<256x64xf32> -> vector<256x64xf32>
    %c0_4 = arith.constant 0 : index
    %c0_5 = arith.constant 0 : index
    %5 = vector.load %arg3[%c0_4, %c0_5] : memref<1x64xf32, #tpu.memory_space<vmem>>, vector<1x64xf32>
    %6 = vector.broadcast %5 : vector<1x64xf32> to vector<256x64xf32>
    %7 = arith.addf %4, %6 : vector<256x64xf32>
    %cst_6 = arith.constant 5.000000e-01 : f32
    %8 = vector.broadcast %cst_6 : f32 to vector<256x64xf32>
    %9 = arith.mulf %8, %7 : vector<256x64xf32>
    %cst_7 = arith.constant 0.707106769 : f32
    %10 = vector.broadcast %cst_7 : f32 to vector<256x64xf32>
    %11 = arith.mulf %7, %10 : vector<256x64xf32>
    %12 = math.erf %11 : vector<256x64xf32>
    %cst_8 = arith.constant 1.000000e+00 : f32
    %13 = vector.broadcast %cst_8 : f32 to vector<256x64xf32>
    %14 = arith.addf %13, %12 : vector<256x64xf32>
    %15 = arith.mulf %9, %14 : vector<256x64xf32>
    %16 = arith.truncf %15 : vector<256x64xf32> to vector<256x64xbf16>
    %c0_9 = arith.constant 0 : index
    %c0_10 = arith.constant 0 : index
    %17 = vector.load %arg4[%c0_9, %c0_10] : memref<64x64xbf16, #tpu.memory_space<vmem>>, vector<64x64xbf16>
    %cst_11 = arith.constant dense<0.000000e+00> : vector<256x64xf32>
    %18 = tpu.matmul %16, %17, %cst_11 {dimension_numbers = #tpu.dot_dimension_numbers<[1], [0], [0], [1], [0, 0, 1, 1], [], []>} : vector<256x64xbf16>, vector<64x64xbf16>, vector<256x64xf32> -> vector<256x64xf32>
    %c0_12 = arith.constant 0 : index
    %c0_13 = arith.constant 0 : index
    %19 = vector.load %arg5[%c0_12, %c0_13] : memref<1x64xf32, #tpu.memory_space<vmem>>, vector<1x64xf32>
    %20 = vector.broadcast %19 : vector<1x64xf32> to vector<256x64xf32>
    %21 = arith.addf %18, %20 : vector<256x64xf32>
    %cst_14 = arith.constant 5.000000e-01 : f32
    %22 = vector.broadcast %cst_14 : f32 to vector<256x64xf32>
    %23 = arith.mulf %22, %21 : vector<256x64xf32>
    %cst_15 = arith.constant 0.707106769 : f32
    %24 = vector.broadcast %cst_15 : f32 to vector<256x64xf32>
    %25 = arith.mulf %21, %24 : vector<256x64xf32>
    %26 = math.erf %25 : vector<256x64xf32>
    %cst_16 = arith.constant 1.000000e+00 : f32
    %27 = vector.broadcast %cst_16 : f32 to vector<256x64xf32>
    %28 = arith.addf %27, %26 : vector<256x64xf32>
    %29 = arith.mulf %23, %28 : vector<256x64xf32>
    %30 = arith.truncf %29 : vector<256x64xf32> to vector<256x64xbf16>
    %c0_17 = arith.constant 0 : index
    %c0_18 = arith.constant 0 : index
    %31 = vector.load %arg6[%c0_17, %c0_18] : memref<64x128xbf16, #tpu.memory_space<vmem>>, vector<64x128xbf16>
    %cst_19 = arith.constant dense<0.000000e+00> : vector<256x128xf32>
    %32 = tpu.matmul %30, %31, %cst_19 {dimension_numbers = #tpu.dot_dimension_numbers<[1], [0], [0], [1], [0, 0, 1, 1], [], []>} : vector<256x64xbf16>, vector<64x128xbf16>, vector<256x128xf32> -> vector<256x128xf32>
    %c0_20 = arith.constant 0 : index
    %c0_21 = arith.constant 0 : index
    %33 = vector.load %arg7[%c0_20, %c0_21] : memref<1x128xf32, #tpu.memory_space<vmem>>, vector<1x128xf32>
    %34 = vector.broadcast %33 : vector<1x128xf32> to vector<256x128xf32>
    %35 = arith.addf %32, %34 : vector<256x128xf32>
    %cst_22 = arith.constant 5.000000e-01 : f32
    %36 = vector.broadcast %cst_22 : f32 to vector<256x128xf32>
    %37 = arith.mulf %36, %35 : vector<256x128xf32>
    %cst_23 = arith.constant 0.707106769 : f32
    %38 = vector.broadcast %cst_23 : f32 to vector<256x128xf32>
    %39 = arith.mulf %35, %38 : vector<256x128xf32>
    %40 = math.erf %39 : vector<256x128xf32>
    %cst_24 = arith.constant 1.000000e+00 : f32
    %41 = vector.broadcast %cst_24 : f32 to vector<256x128xf32>
    %42 = arith.addf %41, %40 : vector<256x128xf32>
    %43 = arith.mulf %37, %42 : vector<256x128xf32>
    %44 = arith.truncf %43 : vector<256x128xf32> to vector<256x128xbf16>
    %c0_25 = arith.constant 0 : index
    %c0_26 = arith.constant 0 : index
    %45 = vector.load %arg8[%c0_25, %c0_26] : memref<128x256xbf16, #tpu.memory_space<vmem>>, vector<128x256xbf16>
    %cst_27 = arith.constant dense<0.000000e+00> : vector<256x256xf32>
    %46 = tpu.matmul %44, %45, %cst_27 {dimension_numbers = #tpu.dot_dimension_numbers<[1], [0], [0], [1], [0, 0, 1, 1], [], []>} : vector<256x128xbf16>, vector<128x256xbf16>, vector<256x256xf32> -> vector<256x256xf32>
    %c0_28 = arith.constant 0 : index
    %c0_29 = arith.constant 0 : index
    %47 = vector.load %arg9[%c0_28, %c0_29] : memref<1x256xf32, #tpu.memory_space<vmem>>, vector<1x256xf32>
    %48 = vector.broadcast %47 : vector<1x256xf32> to vector<256x256xf32>
    %49 = arith.addf %46, %48 : vector<256x256xf32>
    %cst_30 = arith.constant dense<0xFF800000> : vector<256xf32>
    %50 = vector.multi_reduction <maximumf>, %49, %cst_30 [0] : vector<256x256xf32> to vector<256xf32>
    %51 = vector.shape_cast %50 : vector<256xf32> to vector<1x256xf32>
    %c0_31 = arith.constant 0 : index
    %c0_32 = arith.constant 0 : index
    %c0_33 = arith.constant 0 : index
    %52 = vector.load %arg10[%c0_31, %c0_32, %c0_33] : memref<1x1x256xf32, #tpu.memory_space<vmem>>, vector<1x1x256xf32>
    %53 = vector.shape_cast %52 : vector<1x1x256xf32> to vector<1x256xf32>
    %54 = vector.shape_cast %51 : vector<1x256xf32> to vector<1x1x256xf32>
    tpu.vector_store %arg10[%c0_31, %c0_32, %c0_33], %54 {strides = array<i32>} : memref<1x1x256xf32, #tpu.memory_space<vmem>>, vector<1x1x256xf32>,
    return
  }
  func.func @transform_0(%arg0: i32) -> (i32, i32, i32) {
    %c0_i32 = arith.constant 0 : i32
    %c0_i32_0 = arith.constant 0 : i32
    %c0_i32_1 = arith.constant 0 : i32
    return %arg0, %c0_i32, %c0_i32_0 : i32, i32, i32
  }
  func.func @transform_1(%arg0: i32) -> (i32, i32) {
    %c0_i32 = arith.constant 0 : i32
    %c0_i32_0 = arith.constant 0 : i32
    %c0_i32_1 = arith.constant 0 : i32
    return %c0_i32, %c0_i32_0 : i32, i32
  }
  func.func @transform_2(%arg0: i32) -> (i32, i32) {
    %c0_i32 = arith.constant 0 : i32
    %c0_i32_0 = arith.constant 0 : i32
    %c0_i32_1 = arith.constant 0 : i32
    return %c0_i32, %c0_i32_0 : i32, i32
  }
  func.func @transform_3(%arg0: i32) -> (i32, i32) {
    %c0_i32 = arith.constant 0 : i32
    %c0_i32_0 = arith.constant 0 : i32
    %c0_i32_1 = arith.constant 0 : i32
    return %c0_i32, %c0_i32_0 : i32, i32
  }
  func.func @transform_4(%arg0: i32) -> (i32, i32) {
    %c0_i32 = arith.constant 0 : i32
    %c0_i32_0 = arith.constant 0 : i32
    %c0_i32_1 = arith.constant 0 : i32
    return %c0_i32, %c0_i32_0 : i32, i32
  }
  func.func @transform_5(%arg0: i32) -> (i32, i32) {
    %c0_i32 = arith.constant 0 : i32
    %c0_i32_0 = arith.constant 0 : i32
    %c0_i32_1 = arith.constant 0 : i32
    return %c0_i32, %c0_i32_0 : i32, i32
  }
  func.func @transform_6(%arg0: i32) -> (i32, i32) {
    %c0_i32 = arith.constant 0 : i32
    %c0_i32_0 = arith.constant 0 : i32
    %c0_i32_1 = arith.constant 0 : i32
    return %c0_i32, %c0_i32_0 : i32, i32
  }
  func.func @transform_7(%arg0: i32) -> (i32, i32) {
    %c0_i32 = arith.constant 0 : i32
    %c0_i32_0 = arith.constant 0 : i32
    %c0_i32_1 = arith.constant 0 : i32
    return %c0_i32, %c0_i32_0 : i32, i32
  }
  func.func @transform_8(%arg0: i32) -> (i32, i32) {
    %c0_i32 = arith.constant 0 : i32
    %c0_i32_0 = arith.constant 0 : i32
    %c0_i32_1 = arith.constant 0 : i32
    return %c0_i32, %c0_i32_0 : i32, i32
  }
  func.func @transform_9(%arg0: i32) -> (i32, i32, i32) {
    %c0_i32 = arith.constant 0 : i32
    %c0_i32_0 = arith.constant 0 : i32
    %c0_i32_1 = arith.constant 0 : i32
    return %arg0, %c0_i32, %c0_i32_0 : i32, i32, i32
  }
}

</mosaic_0001>

<llo_original>
// kernel: tpu_custom_call.1
$region0: #{tpu_custom_call.1}
  #allocation0 [shape = 'u32[]', space=smem, size = 0x4, offset = 0x4, fixed_abs, tag = 'smem constant byte address 0x4 - core index']
  #allocation1 [shape = 'u32[144,128]{1,0:T(1,128)}', space=vmem, size = 0x12000, scoped, tag = 'internal scratch']
  %s0 = inlined_call_operand.hbm [shape: f32[2,8,256], index: 0, kind: input, shape index: {}]
  %s1 = inlined_call_operand.hbm [shape: f32[8,64], index: 1, kind: input, shape index: {}]
  %s2 = inlined_call_operand.vmem [shape: f32[1,64], index: 2, kind: input, shape index: {}]
  %s3 = inlined_call_operand.hbm [shape: bf16[64,64], index: 3, kind: input, shape index: {}]
  %s4 = inlined_call_operand.vmem [shape: f32[1,64], index: 4, kind: input, shape index: {}]
  %s5 = inlined_call_operand.hbm [shape: bf16[64,128], index: 5, kind: input, shape index: {}]
  %s6 = inlined_call_operand.vmem [shape: f32[1,128], index: 6, kind: input, shape index: {}]
  %s7 = inlined_call_operand.hbm [shape: bf16[128,256], index: 7, kind: input, shape index: {}]
  %s8 = inlined_call_operand.vmem [shape: f32[1,256], index: 8, kind: input, shape index: {}]
  %s9 = inlined_call_operand.hbm [shape: f32[2,1,256], index: 9, kind: output, shape index: {}]
  %s10 = sld [smem:[#allocation0]]
  $region89: #{tpu_custom_call.1} parent=0
    _
  %s12 = ssub.s32 1, %s10
  %s13 = scalar_select 0, %s12, %s10
  $region1: #{tpu_custom_call.1} parent=0
    #allocation2 [shape = 'u8[16384]{0}', space=vmem, size = 0x4000, scoped, tag = 'input window, operand 0']
    #allocation3 [shape = 's32[2]{0}', space=sflag, size = 0x8, scoped, tag = 'scoped memory for tpu_custom_call.1']
    #allocation4 [shape = 's32[2]{0}', space=sflag, size = 0x8, scoped, tag = 'scoped memory for tpu_custom_call.1']
    #allocation5 [shape = 'u8[4096]{0}', space=vmem, size = 0x1000, scoped, tag = 'input window, operand 1, single buffered']
    #allocation6 [shape = 's32[1]{0}', space=sflag, size = 0x4, scoped, tag = 'scoped memory for tpu_custom_call.1']
    #allocation7 [shape = 'u8[16384]{0}', space=vmem, size = 0x4000, scoped, tag = 'input window, operand 3, single buffered']
    #allocation8 [shape = 'u8[16384]{0}', space=vmem, size = 0x4000, scoped, tag = 'input window, operand 5, single buffered']
    #allocation9 [shape = 's32[1]{0}', space=sflag, size = 0x4, scoped, tag = 'scoped memory for tpu_custom_call.1']
    #allocation10 [shape = 'u8[65536]{0}', space=vmem, size = 0x10000, scoped, tag = 'input window, operand 7, single buffered']
    #allocation11 [shape = 'u8[2048]{0}', space=vmem, size = 0x800, scoped, tag = 'output window, operand 0']
    %14 = vsyncpa [#allocation3], 0
    %s15 = scalar_lea.sflag [#allocation3], 1
    %16 = vsyncpa %s15, 0
    %17 = vsyncpa [#allocation6], 0
    %18 = vsyncpa [#allocation9], 0
    %19 = vsyncpa [#allocation4], 0
    %s20 = scalar_lea.sflag [#allocation4], 1
    %21 = vsyncpa %s20, 0
    loop: start=0, step=1, limit=4
    $region2: #{tpu_custom_call.1} parent=1 // loop_pre_header
      _
    $region3: #{tpu_custom_call.1} parent=1 // loop_header
      %s23 = sphi 0, %s27
      %p24 = scmp.ge.s32.totalorder %s23, 4
      %s33 = sphi 0, %s35
      %s36 = sphi 0, %s33
      %s37 = sphi 0, %s36
      %s53 = sphi 0, %s37
      %s57 = sphi 0, %s57
      %s59 = sphi 0, %s57
      %s60 = sphi 0, %s59
      %s74 = sphi 0, %s60
      %s78 = sphi 0, %s78
      %s80 = sphi 0, %s78
      %s81 = sphi 0, %s80
      %s95 = sphi 0, %s81
      %s99 = sphi 0, %s99
      %s101 = sphi 0, %s99
      %s102 = sphi 0, %s101
      %s116 = sphi 0, %s102
      %s120 = sphi 0, %s120
      %s122 = sphi 0, %s120
      %s123 = sphi 0, %s122
      %s137 = sphi 0, %s123
      %s141 = sphi 0, %s141
      %s143 = sphi 0, %s141
      %s144 = sphi 0, %s143
      %s158 = sphi 0, %s144
      %s162 = sphi 0, %s162
      %s164 = sphi 0, %s162
      %s165 = sphi 0, %s164
      %s179 = sphi 0, %s165
      %s183 = sphi 0, %s183
      %s185 = sphi 0, %s183
      %s186 = sphi 0, %s185
      %s200 = sphi 0, %s186
      %s204 = sphi 0, %s204
      %s206 = sphi 0, %s204
      %s207 = sphi 0, %s206
      %s221 = sphi 0, %s207
      %s227 = sphi 0, %s229
      %s230 = sphi 0, %s227
      %s231 = sphi 0, %s230
      %s247 = sphi 0, %s231
    $region4: #{tpu_custom_call.1} parent=1 // loop_header_branch
      %26 = sbr.rel (%p24) target = $region8
    $region5: #{tpu_custom_call.1} parent=1 // loop_body
      %s28 = ssub.s32 %s23, 1
      %s29 = ssub.s32 %s23, 2
      %s30 = sadd.s32 %s23, 1
      %s31 = ssub.s32 %s23, %s30
      %p32 = scmp.eq.s32.totalorder %s31, 0
      %s34 = sadd.s32 %s33, 1
      %s35 = scalar_select %p32, %s33, %s34
      %p38 = pneg %p32
      %p39 = scmp.eq.s32.totalorder %s23, 1
      %p40 = por %p38, %p39
      %p41 = scmp.ne.s32.totalorder %s33, %s36
      %p42 = scmp.eq.s32.totalorder %s23, 0
      %p43 = por %p41, %p42
      %p44 = scmp.ne.s32.totalorder %s33, %s36
      %p45 = scmp.eq.s32.totalorder %s28, 1
      %p46 = por %p44, %p45
      %p47 = scmp.ne.s32.totalorder %s36, %s37
      %p48 = scmp.eq.s32.totalorder %s28, 0
      %p49 = por %p47, %p48
      %p50 = scmp.ne.s32.totalorder %s36, %s37
      %p51 = scmp.eq.s32.totalorder %s29, 1
      %p52 = por %p50, %p51
      %p54 = scmp.ne.s32.totalorder %s37, %s53
      %p55 = scmp.eq.s32.totalorder %s29, 0
      %p56 = por %p54, %p55
      %s58 = sadd.s32 %s57, 1
      %p61 = scmp.eq.s32.totalorder %s23, 1
      %p62 = scmp.ne.s32.totalorder %s57, %s59
      %p63 = scmp.eq.s32.totalorder %s23, 0
      %p64 = por %p62, %p63
      %p65 = scmp.ne.s32.totalorder %s57, %s59
      %p66 = scmp.eq.s32.totalorder %s28, 1
      %p67 = por %p65, %p66
      %p68 = scmp.ne.s32.totalorder %s59, %s60
      %p69 = scmp.eq.s32.totalorder %s28, 0
      %p70 = por %p68, %p69
      %p71 = scmp.ne.s32.totalorder %s59, %s60
      %p72 = scmp.eq.s32.totalorder %s29, 1
      %p73 = por %p71, %p72
      %p75 = scmp.ne.s32.totalorder %s60, %s74
      %p76 = scmp.eq.s32.totalorder %s29, 0
      %p77 = por %p75, %p76
      %s79 = sadd.s32 %s78, 1
      %p82 = scmp.eq.s32.totalorder %s23, 1
      %p83 = scmp.ne.s32.totalorder %s78, %s80
      %p84 = scmp.eq.s32.totalorder %s23, 0
      %p85 = por %p83, %p84
      %p86 = scmp.ne.s32.totalorder %s78, %s80
      %p87 = scmp.eq.s32.totalorder %s28, 1
      %p88 = por %p86, %p87
      %p89 = scmp.ne.s32.totalorder %s80, %s81
      %p90 = scmp.eq.s32.totalorder %s28, 0
      %p91 = por %p89, %p90
      %p92 = scmp.ne.s32.totalorder %s80, %s81
      %p93 = scmp.eq.s32.totalorder %s29, 1
      %p94 = por %p92, %p93
      %p96 = scmp.ne.s32.totalorder %s81, %s95
      %p97 = scmp.eq.s32.totalorder %s29, 0
      %p98 = por %p96, %p97
      %s100 = sadd.s32 %s99, 1
      %p103 = scmp.eq.s32.totalorder %s23, 1
      %p104 = scmp.ne.s32.totalorder %s99, %s101
      %p105 = scmp.eq.s32.totalorder %s23, 0
      %p106 = por %p104, %p105
      %p107 = scmp.ne.s32.totalorder %s99, %s101
      %p108 = scmp.eq.s32.totalorder %s28, 1
      %p109 = por %p107, %p108
      %p110 = scmp.ne.s32.totalorder %s101, %s102
      %p111 = scmp.eq.s32.totalorder %s28, 0
      %p112 = por %p110, %p111
      %p113 = scmp.ne.s32.totalorder %s101, %s102
      %p114 = scmp.eq.s32.totalorder %s29, 1
      %p115 = por %p113, %p114
      %p117 = scmp.ne.s32.totalorder %s102, %s116
      %p118 = scmp.eq.s32.totalorder %s29, 0
      %p119 = por %p117, %p118
      %s121 = sadd.s32 %s120, 1
      %p124 = scmp.eq.s32.totalorder %s23, 1
      %p125 = scmp.ne.s32.totalorder %s120, %s122
      %p126 = scmp.eq.s32.totalorder %s23, 0
      %p127 = por %p125, %p126
      %p128 = scmp.ne.s32.totalorder %s120, %s122
      %p129 = scmp.eq.s32.totalorder %s28, 1
      %p130 = por %p128, %p129
      %p131 = scmp.ne.s32.totalorder %s122, %s123
      %p132 = scmp.eq.s32.totalorder %s28, 0
      %p133 = por %p131, %p132
      %p134 = scmp.ne.s32.totalorder %s122, %s123
      %p135 = scmp.eq.s32.totalorder %s29, 1
      %p136 = por %p134, %p135
      %p138 = scmp.ne.s32.totalorder %s123, %s137
      %p139 = scmp.eq.s32.totalorder %s29, 0
      %p140 = por %p138, %p139
      %s142 = sadd.s32 %s141, 1
      %p145 = scmp.eq.s32.totalorder %s23, 1
      %p146 = scmp.ne.s32.totalorder %s141, %s143
      %p147 = scmp.eq.s32.totalorder %s23, 0
      %p148 = por %p146, %p147
      %p149 = scmp.ne.s32.totalorder %s141, %s143
      %p150 = scmp.eq.s32.totalorder %s28, 1
      %p151 = por %p149, %p150
      %p152 = scmp.ne.s32.totalorder %s143, %s144
      %p153 = scmp.eq.s32.totalorder %s28, 0
      %p154 = por %p152, %p153
      %p155 = scmp.ne.s32.totalorder %s143, %s144
      %p156 = scmp.eq.s32.totalorder %s29, 1
      %p157 = por %p155, %p156
      %p159 = scmp.ne.s32.totalorder %s144, %s158
      %p160 = scmp.eq.s32.totalorder %s29, 0
      %p161 = por %p159, %p160
      %s163 = sadd.s32 %s162, 1
      %p166 = scmp.eq.s32.totalorder %s23, 1
      %p167 = scmp.ne.s32.totalorder %s162, %s164
      %p168 = scmp.eq.s32.totalorder %s23, 0
      %p169 = por %p167, %p168
      %p170 = scmp.ne.s32.totalorder %s162, %s164
      %p171 = scmp.eq.s32.totalorder %s28, 1
      %p172 = por %p170, %p171
      %p173 = scmp.ne.s32.totalorder %s164, %s165
      %p174 = scmp.eq.s32.totalorder %s28, 0
      %p175 = por %p173, %p174
      %p176 = scmp.ne.s32.totalorder %s164, %s165
      %p177 = scmp.eq.s32.totalorder %s29, 1
      %p178 = por %p176, %p177
      %p180 = scmp.ne.s32.totalorder %s165, %s179
      %p181 = scmp.eq.s32.totalorder %s29, 0
      %p182 = por %p180, %p181
      %s184 = sadd.s32 %s183, 1
      %p187 = scmp.eq.s32.totalorder %s23, 1
      %p188 = scmp.ne.s32.totalorder %s183, %s185
      %p189 = scmp.eq.s32.totalorder %s23, 0
      %p190 = por %p188, %p189
      %p191 = scmp.ne.s32.totalorder %s183, %s185
      %p192 = scmp.eq.s32.totalorder %s28, 1
      %p193 = por %p191, %p192
      %p194 = scmp.ne.s32.totalorder %s185, %s186
      %p195 = scmp.eq.s32.totalorder %s28, 0
      %p196 = por %p194, %p195
      %p197 = scmp.ne.s32.totalorder %s185, %s186
      %p198 = scmp.eq.s32.totalorder %s29, 1
      %p199 = por %p197, %p198
      %p201 = scmp.ne.s32.totalorder %s186, %s200
      %p202 = scmp.eq.s32.totalorder %s29, 0
      %p203 = por %p201, %p202
      %s205 = sadd.s32 %s204, 1
      %p208 = scmp.eq.s32.totalorder %s23, 1
      %p209 = scmp.ne.s32.totalorder %s204, %s206
      %p210 = scmp.eq.s32.totalorder %s23, 0
      %p211 = por %p209, %p210
      %p212 = scmp.ne.s32.totalorder %s204, %s206
      %p213 = scmp.eq.s32.totalorder %s28, 1
      %p214 = por %p212, %p213
      %p215 = scmp.ne.s32.totalorder %s206, %s207
      %p216 = scmp.eq.s32.totalorder %s28, 0
      %p217 = por %p215, %p216
      %p218 = scmp.ne.s32.totalorder %s206, %s207
      %p219 = scmp.eq.s32.totalorder %s29, 1
      %p220 = por %p218, %p219
      %p222 = scmp.ne.s32.totalorder %s207, %s221
      %p223 = scmp.eq.s32.totalorder %s29, 0
      %p224 = por %p222, %p223
      %s225 = ssub.s32 %s23, %s30
      %p226 = scmp.eq.s32.totalorder %s225, 0
      %s228 = sadd.s32 %s227, 1
      %s229 = scalar_select %p226, %s227, %s228
      %p232 = pneg %p226
      %p233 = scmp.eq.s32.totalorder %s23, 1
      %p234 = por %p232, %p233
      %p235 = scmp.ne.s32.totalorder %s227, %s230
      %p236 = scmp.eq.s32.totalorder %s23, 0
      %p237 = por %p235, %p236
      %p238 = scmp.ne.s32.totalorder %s227, %s230
      %p239 = scmp.eq.s32.totalorder %s28, 1
      %p240 = por %p238, %p239
      %p241 = scmp.ne.s32.totalorder %s230, %s231
      %p242 = scmp.eq.s32.totalorder %s28, 0
      %p243 = por %p241, %p242
      %p244 = scmp.ne.s32.totalorder %s230, %s231
      %p245 = scmp.eq.s32.totalorder %s29, 1
      %p246 = por %p244, %p245
      %p248 = scmp.ne.s32.totalorder %s231, %s247
      %p249 = scmp.eq.s32.totalorder %s29, 0
      %p250 = por %p248, %p249
      %p251 = scmp.le.s32.totalorder 1, %s23
      %p252 = scmp.lt.s32.totalorder %s23, 3
      %p253 = pnand %p251, %p252
      %p254 = pneg %p253
      // Predicated region
      $region9: #{tpu_custom_call.1} parent=5 // pred_check
        _
      $region10: #{tpu_custom_call.1} parent=5 // pred_check_branch
        %256 = sbr.rel (%p253) target = $region12
      $region11: #{tpu_custom_call.1} parent=5 // pred_region
        %s257 = ssub.s32 %s23, 1
        // Predicated region
        $region13: #{tpu_custom_call.1} parent=11 // pred_check
          %p258 = pneg %p70
        $region14: #{tpu_custom_call.1} parent=11 // pred_check_branch
          %260 = sbr.rel (%p258) target = $region16
        $region15: #{tpu_custom_call.1} parent=11 // pred_region
          %s262 = ssub.s32 128, 128
          %263 = vsyncadd [#allocation6], %s262
          %s265 = sshll.u32 [#allocation5], 4
          %s266 = int_to_ptr.vmem [resolvable:$true] %s265
          %268 = dma.hbm_to_vmem [thread:$0]  %s1, 128, %s266, [#allocation6]
        $region16: #{tpu_custom_call.1} parent=11 // pred_fallthru
          _
        // Predicated region
        $region17: #{tpu_custom_call.1} parent=11 // pred_check
          %p269 = pneg %p91
        $region18: #{tpu_custom_call.1} parent=11 // pred_check_branch
          %271 = sbr.rel (%p269) target = $region20
        $region19: #{tpu_custom_call.1} parent=11 // pred_region
          _
        $region20: #{tpu_custom_call.1} parent=11 // pred_fallthru
          _
        // Predicated region
        $region21: #{tpu_custom_call.1} parent=11 // pred_check
          %p272 = pneg %p112
        $region22: #{tpu_custom_call.1} parent=11 // pred_check_branch
          %274 = sbr.rel (%p272) target = $region24
        $region23: #{tpu_custom_call.1} parent=11 // pred_region
          %s276 = ssub.s32 512, 512
          %277 = vsyncadd [#allocation6], %s276
          %s278 = sshll.u32 [#allocation7], 4
          %s279 = int_to_ptr.vmem [resolvable:$true] %s278
          %284 = dma.hbm_to_vmem [thread:$0]  %s3, 512, %s279, [#allocation6], 64, 64, 4
        $region24: #{tpu_custom_call.1} parent=11 // pred_fallthru
          _
        // Predicated region
        $region25: #{tpu_custom_call.1} parent=11 // pred_check
          %p285 = pneg %p133
        $region26: #{tpu_custom_call.1} parent=11 // pred_check_branch
          %287 = sbr.rel (%p285) target = $region28
        $region27: #{tpu_custom_call.1} parent=11 // pred_region
          _
        $region28: #{tpu_custom_call.1} parent=11 // pred_fallthru
          _
        // Predicated region
        $region29: #{tpu_custom_call.1} parent=11 // pred_check
          %p288 = pneg %p154
        $region30: #{tpu_custom_call.1} parent=11 // pred_check_branch
          %290 = sbr.rel (%p288) target = $region32
        $region31: #{tpu_custom_call.1} parent=11 // pred_region
          %s292 = ssub.s32 512, 512
          %293 = vsyncadd [#allocation9], %s292
          %s294 = sshll.u32 [#allocation8], 4
          %s295 = int_to_ptr.vmem [resolvable:$true] %s294
          %300 = dma.hbm_to_vmem [thread:$0]  %s5, 512, %s295, [#allocation9], 64, 64, 4
        $region32: #{tpu_custom_call.1} parent=11 // pred_fallthru
          _
        // Predicated region
        $region33: #{tpu_custom_call.1} parent=11 // pred_check
          %p301 = pneg %p175
        $region34: #{tpu_custom_call.1} parent=11 // pred_check_branch
          %303 = sbr.rel (%p301) target = $region36
        $region35: #{tpu_custom_call.1} parent=11 // pred_region
          _
        $region36: #{tpu_custom_call.1} parent=11 // pred_fallthru
          _
        // Predicated region
        $region37: #{tpu_custom_call.1} parent=11 // pred_check
          %p304 = pneg %p196
        $region38: #{tpu_custom_call.1} parent=11 // pred_check_branch
          %306 = sbr.rel (%p304) target = $region40
        $region39: #{tpu_custom_call.1} parent=11 // pred_region
          %s308 = ssub.s32 2048, 2048
          %309 = vsyncadd [#allocation9], %s308
          %s310 = sshll.u32 [#allocation10], 4
          %s311 = int_to_ptr.vmem [resolvable:$true] %s310
          %316 = dma.hbm_to_vmem [thread:$0]  %s7, 2048, %s311, [#allocation9], 128, 128, 8
        $region40: #{tpu_custom_call.1} parent=11 // pred_fallthru
          _
        // Predicated region
        $region41: #{tpu_custom_call.1} parent=11 // pred_check
          %p317 = pneg %p217
        $region42: #{tpu_custom_call.1} parent=11 // pred_check_branch
          %319 = sbr.rel (%p317) target = $region44
        $region43: #{tpu_custom_call.1} parent=11 // pred_region
          _
        $region44: #{tpu_custom_call.1} parent=11 // pred_fallthru
          _
      $region12: #{tpu_custom_call.1} parent=5 // pred_fallthru
        _
      %p320 = scmp.lt.s32.totalorder %s23, 2
      // Predicated region
      $region45: #{tpu_custom_call.1} parent=5 // pred_check
        %p321 = pneg %p320
      $region46: #{tpu_custom_call.1} parent=5 // pred_check_branch
        %323 = sbr.rel (%p321) target = $region48
      $region47: #{tpu_custom_call.1} parent=5 // pred_region
        // Predicated region
        $region49: #{tpu_custom_call.1} parent=47 // pred_check
          %p324 = pneg %p43
        $region50: #{tpu_custom_call.1} parent=47 // pred_check_branch
          %326 = sbr.rel (%p324) target = $region52
        $region51: #{tpu_custom_call.1} parent=47 // pred_region
          %s327 = sand.u32 %s33, 1
          %s328 = scalar_lea.sflag [#allocation3], %s327
          %s329 = sand.u32 %s33, 1
          %s330 = smul.addr %s329, 16
          %s331 = scalar_lea.vmem [#allocation2], %s330
          %s333 = ssub.s32 256, 256
          %334 = vsyncadd %s328, %s333
          %s335 = smul.addr %s23, 2
          %s336 = smul.addr %s335, 128
          %s337 = scalar_lea.hbm %s0, %s336
          %s339 = sshll.u32 %s331, 4
          %s340 = int_to_ptr.vmem [resolvable:$true] %s339
          %342 = dma.hbm_to_vmem [thread:$0]  %s337, 256, %s340, %s328
        $region52: #{tpu_custom_call.1} parent=47 // pred_fallthru
          _
      $region48: #{tpu_custom_call.1} parent=5 // pred_fallthru
        _
      %p343 = scmp.le.s32.totalorder 1, %s23
      %p344 = scmp.lt.s32.totalorder %s23, 3
      %p345 = pnand %p343, %p344
      %p346 = pneg %p345
      // Predicated region
      $region53: #{tpu_custom_call.1} parent=5 // pred_check
        _
      $region54: #{tpu_custom_call.1} parent=5 // pred_check_branch
        %348 = sbr.rel (%p345) target = $region56
      $region55: #{tpu_custom_call.1} parent=5 // pred_region
        %s349 = ssub.s32 %s23, 1
        %s350 = sand.u32 %s36, 1
        %s351 = scalar_lea.sflag [#allocation3], %s350
        %s352 = sand.u32 %s36, 1
        %s353 = smul.addr %s352, 16
        %s354 = scalar_lea.vmem [#allocation2], %s353
        // Predicated region
        $region57: #{tpu_custom_call.1} parent=55 // pred_check
          %p355 = pneg %p49
        $region58: #{tpu_custom_call.1} parent=55 // pred_check_branch
          %357 = sbr.rel (%p355) target = $region60
        $region59: #{tpu_custom_call.1} parent=55 // pred_region
          %358 = dma.done %s351, 256
        $region60: #{tpu_custom_call.1} parent=55 // pred_fallthru
          _
        // Predicated region
        $region61: #{tpu_custom_call.1} parent=55 // pred_check
          %p359 = pneg %p70
        $region62: #{tpu_custom_call.1} parent=55 // pred_check_branch
          %361 = sbr.rel (%p359) target = $region64
        $region63: #{tpu_custom_call.1} parent=55 // pred_region
          %362 = dma.done [#allocation6], 128
        $region64: #{tpu_custom_call.1} parent=55 // pred_fallthru
          _
        // Predicated region
        $region65: #{tpu_custom_call.1} parent=55 // pred_check
          %p363 = pneg %p112
        $region66: #{tpu_custom_call.1} parent=55 // pred_check_branch
          %365 = sbr.rel (%p363) target = $region68
        $region67: #{tpu_custom_call.1} parent=55 // pred_region
          %366 = dma.done [#allocation6], 512
        $region68: #{tpu_custom_call.1} parent=55 // pred_fallthru
          _
        // Predicated region
        $region69: #{tpu_custom_call.1} parent=55 // pred_check
          %p367 = pneg %p154
        $region70: #{tpu_custom_call.1} parent=55 // pred_check_branch
          %369 = sbr.rel (%p367) target = $region72
        $region71: #{tpu_custom_call.1} parent=55 // pred_region
          %370 = dma.done [#allocation9], 512
        $region72: #{tpu_custom_call.1} parent=55 // pred_fallthru
          _
        // Predicated region
        $region73: #{tpu_custom_call.1} parent=55 // pred_check
          %p371 = pneg %p196
        $region74: #{tpu_custom_call.1} parent=55 // pred_check_branch
          %373 = sbr.rel (%p371) target = $region76
        $region75: #{tpu_custom_call.1} parent=55 // pred_region
          %374 = dma.done [#allocation9], 2048
        $region76: #{tpu_custom_call.1} parent=55 // pred_fallthru
          _
        %s375 = sand.u32 %s36, 1
        %s376 = scalar_lea.sflag [#allocation3], %s375
        %s377 = sand.u32 %s36, 1
        %s378 = smul.addr %s377, 16
        %s379 = scalar_lea.vmem [#allocation2], %s378
        %p380 = pneg %p49
        %p381 = pneg %p46
        %p382 = pneg %p70
        %p383 = pneg %p67
        %p384 = pneg %p91
        %p385 = pneg %p88
        %p386 = pneg %p112
        %p387 = pneg %p109
        %p388 = pneg %p133
        %p389 = pneg %p130
        %p390 = pneg %p154
        %p391 = pneg %p151
        %p392 = pneg %p175
        %p393 = pneg %p172
        %p394 = pneg %p196
        %p395 = pneg %p193
        %p396 = pneg %p217
        %p397 = pneg %p214
        %p398 = pneg %p243
        %p399 = pneg %p240
        %s400 = sand.u32 %s230, 1
        %s401 = scalar_lea.sflag [#allocation4], %s400
        %s402 = sand.u32 %s230, 1
        %s403 = smul.addr %s402, 2
        %s404 = scalar_lea.vmem [#allocation11], %s403
        %v406 = vld [vmem:[%s354] sm:$0xff]
        %v407 = vld [vmem:[%s354 + $0x8] sm:$0xff]
        %408 = vxpose.xlu0.b32.start [1/16] %v406, 128
        %409 = vxpose.xlu0.b32.cont [2/16] 0.0, 128
        %410 = vxpose.xlu0.b32.cont [3/16] 0.0, 128
        %411 = vxpose.xlu0.b32.cont [4/16] 0.0, 128
        %412 = vxpose.xlu0.b32.cont [5/16] 0.0, 128
        %413 = vxpose.xlu0.b32.cont [6/16] 0.0, 128
        %414 = vxpose.xlu0.b32.cont [7/16] 0.0, 128
        %415 = vxpose.xlu0.b32.cont [8/16] 0.0, 128
        %416 = vxpose.xlu0.b32.cont [9/16] 0.0, 128
        %417 = vxpose.xlu0.b32.cont [10/16] 0.0, 128
        %418 = vxpose.xlu0.b32.cont [11/16] 0.0, 128
        %419 = vxpose.xlu0.b32.cont [12/16] 0.0, 128
        %420 = vxpose.xlu0.b32.cont [13/16] 0.0, 128
        %421 = vxpose.xlu0.b32.cont [14/16] 0.0, 128
        %422 = vxpose.xlu0.b32.cont [15/16] 0.0, 128
        %423 = vxpose.xlu0.b32.end [16/16] 0.0, 128
        %v424 = vpop.trf.xlu0
        %v425 = vpop.trf.xlu0
        %v426 = vpop.trf.xlu0
        %v427 = vpop.trf.xlu0
        %v428 = vpop.trf.xlu0
        %v429 = vpop.trf.xlu0
        %v430 = vpop.trf.xlu0
        %v431 = vpop.trf.xlu0
        %v432 = vpop.trf.xlu0
        %v433 = vpop.trf.xlu0
        %v434 = vpop.trf.xlu0
        %v435 = vpop.trf.xlu0
        %v436 = vpop.trf.xlu0
        %v437 = vpop.trf.xlu0
        %v438 = vpop.trf.xlu0
        %v439 = vpop.trf.xlu0
        %440 = vxpose.xlu0.b32.start [1/16] %v407, 128
        %441 = vxpose.xlu0.b32.cont [2/16] 0.0, 128
        %442 = vxpose.xlu0.b32.cont [3/16] 0.0, 128
        %443 = vxpose.xlu0.b32.cont [4/16] 0.0, 128
        %444 = vxpose.xlu0.b32.cont [5/16] 0.0, 128
        %445 = vxpose.xlu0.b32.cont [6/16] 0.0, 128
        %446 = vxpose.xlu0.b32.cont [7/16] 0.0, 128
        %447 = vxpose.xlu0.b32.cont [8/16] 0.0, 128
        %448 = vxpose.xlu0.b32.cont [9/16] 0.0, 128
        %449 = vxpose.xlu0.b32.cont [10/16] 0.0, 128
        %450 = vxpose.xlu0.b32.cont [11/16] 0.0, 128
        %451 = vxpose.xlu0.b32.cont [12/16] 0.0, 128
        %452 = vxpose.xlu0.b32.cont [13/16] 0.0, 128
        %453 = vxpose.xlu0.b32.cont [14/16] 0.0, 128
        %454 = vxpose.xlu0.b32.cont [15/16] 0.0, 128
        %455 = vxpose.xlu0.b32.end [16/16] 0.0, 128
        %v456 = vpop.trf.xlu0
        %v457 = vpop.trf.xlu0
        %v458 = vpop.trf.xlu0
        %v459 = vpop.trf.xlu0
        %v460 = vpop.trf.xlu0
        %v461 = vpop.trf.xlu0
        %v462 = vpop.trf.xlu0
        %v463 = vpop.trf.xlu0
        %v464 = vpop.trf.xlu0
        %v465 = vpop.trf.xlu0
        %v466 = vpop.trf.xlu0
        %v467 = vpop.trf.xlu0
        %v468 = vpop.trf.xlu0
        %v469 = vpop.trf.xlu0
        %v470 = vpop.trf.xlu0
        %v471 = vpop.trf.xlu0
        %v472 = vld [vmem:[#allocation5] sm:$0xff]
        %v473 = vld [vmem:[%s2] sm:$0x1]
        %v475 = vlaneseq
        %v476 = vshrl.u32 %v475, 7
        %v477 = vsub.s32 0, %v476
        %v478 = vrot.slane %v473, %v477
        %vm480 = vcmask 64512
        %v482 = vsel %vm480, %v424, 0
        %v485 = vsel %vm480, %v425, 0
        %v488 = vsel %vm480, %v426, 0
        %v491 = vsel %vm480, %v427, 0
        %v494 = vsel %vm480, %v428, 0
        %v497 = vsel %vm480, %v429, 0
        %v500 = vsel %vm480, %v430, 0
        %v503 = vsel %vm480, %v431, 0
        %v506 = vsel %vm480, %v432, 0
        %v509 = vsel %vm480, %v433, 0
        %v512 = vsel %vm480, %v434, 0
        %v515 = vsel %vm480, %v435, 0
        %v518 = vsel %vm480, %v436, 0
        %v521 = vsel %vm480, %v437, 0
        %v524 = vsel %vm480, %v438, 0
        %v527 = vsel %vm480, %v439, 0
        %v530 = vsel %vm480, %v456, 0
        %v533 = vsel %vm480, %v457, 0
        %v536 = vsel %vm480, %v458, 0
        %v539 = vsel %vm480, %v459, 0
        %v542 = vsel %vm480, %v460, 0
        %v545 = vsel %vm480, %v461, 0
        %v548 = vsel %vm480, %v462, 0
        %v551 = vsel %vm480, %v463, 0
        %v554 = vsel %vm480, %v464, 0
        %v557 = vsel %vm480, %v465, 0
        %v560 = vsel %vm480, %v466, 0
        %v563 = vsel %vm480, %v467, 0
        %v566 = vsel %vm480, %v468, 0
        %v569 = vsel %vm480, %v469, 0
        %v572 = vsel %vm480, %v470, 0
        %v575 = vsel %vm480, %v471, 0
        %577 = vmatprep.subr.mxu0 0.0
        %578 = vmatpush1.msra.mxu0 %v472
        %579 = vmatprep.subr.mxu0 0.0
        %580 = vmatpush1.msra.mxu0 0.0
        %581 = vmatprep.subr.mxu0 0.0
        %582 = vmatpush1.msra.mxu0 0.0
        %583 = vmatprep.subr.mxu0 0.0
        %584 = vmatpush1.msra.mxu0 0.0
        %585 = vmatprep.subr.mxu0 0.0
        %586 = vmatpush1.msra.mxu0 0.0
        %587 = vmatprep.subr.mxu0 0.0
        %588 = vmatpush1.msra.mxu0 0.0
        %589 = vmatprep.subr.mxu0 0.0
        %590 = vmatpush1.msra.mxu0 0.0
        %591 = vmatprep.subr.mxu0 0.0
        %592 = vmatpush1.msra.mxu0 0.0
        %593 = vmatprep.subr.mxu0 0.0
        %594 = vmatpush1.msra.mxu0 0.0
        %595 = vmatprep.subr.mxu0 0.0
        %596 = vmatpush1.msra.mxu0 0.0
        %597 = vmatprep.subr.mxu0 0.0
        %598 = vmatpush1.msra.mxu0 0.0
        %599 = vmatprep.subr.mxu0 0.0
        %600 = vmatpush1.msra.mxu0 0.0
        %601 = vmatprep.subr.mxu0 0.0
        %602 = vmatpush1.msra.mxu0 0.0
        %603 = vmatprep.subr.mxu0 0.0
        %604 = vmatpush1.msra.mxu0 0.0
        %605 = vmatprep.subr.mxu0 0.0
        %606 = vmatpush1.msra.mxu0 0.0
        %607 = vmatprep.subr.mxu0 0.0
        %608 = vmatpush1.msra.mxu0 0.0
        %609 = vmatprep.subr.mxu0 0.0
        %610 = vmatpush1.msra.mxu0 0.0
        %611 = vmatprep.subr.mxu0 0.0
        %612 = vmatpush1.msra.mxu0 0.0
        %613 = vmatprep.subr.mxu0 0.0
        %614 = vmatpush1.msra.mxu0 0.0
        %615 = vmatprep.subr.mxu0 0.0
        %616 = vmatpush1.msra.mxu0 0.0
        %617 = vmatprep.subr.mxu0 0.0
        %618 = vmatpush1.msra.mxu0 0.0
        %619 = vmatprep.subr.mxu0 0.0
        %620 = vmatpush1.msra.mxu0 0.0
        %621 = vmatprep.subr.mxu0 0.0
        %622 = vmatpush1.msra.mxu0 0.0
        %623 = vmatprep.subr.mxu0 0.0
        %624 = vmatpush1.msra.mxu0 0.0
        %625 = vmatprep.subr.mxu0 0.0
        %626 = vmatpush1.msra.mxu0 0.0
        %627 = vmatprep.subr.mxu0 0.0
        %628 = vmatpush1.msra.mxu0 0.0
        %629 = vmatprep.subr.mxu0 0.0
        %630 = vmatpush1.msra.mxu0 0.0
        %631 = vmatprep.subr.mxu0 0.0
        %632 = vmatpush1.msra.mxu0 0.0
        %633 = vmatprep.subr.mxu0 0.0
        %634 = vmatpush1.msra.mxu0 0.0
        %635 = vmatprep.subr.mxu0 0.0
        %636 = vmatpush1.msra.mxu0 0.0
        %637 = vmatprep.subr.mxu0 0.0
        %638 = vmatpush1.msra.mxu0 0.0
        %639 = vmatprep.subr.mxu0 0.0
        %640 = vmatpush1.msra.mxu0 0.0
        %641 = vmatprep.mubr.f32.mxu0 0.0
        %642 = vmatmul.mubr.f32.gmra.mrb[0].mxu0 %v482
        %v643 = vpop.f32.mrb[0].mxu0
        %v644 = vadd.f32 %v478, %v643
        %v645 = vpop.f32.mrb[0].mxu0
        %646 = vmatprep.mubr.f32.mxu0 0.0
        %647 = vmatmul.mubr.f32.gmra.mrb[0].mxu0 %v485
        %v648 = vpop.f32.mrb[0].mxu0
        %v649 = vadd.f32 %v478, %v648
        %v650 = vpop.f32.mrb[0].mxu0
        %651 = vmatprep.mubr.f32.mxu0 0.0
        %652 = vmatmul.mubr.f32.gmra.mrb[0].mxu0 %v488
        %v653 = vpop.f32.mrb[0].mxu0
        %v654 = vadd.f32 %v478, %v653
        %v655 = vpop.f32.mrb[0].mxu0
        %656 = vmatprep.mubr.f32.mxu0 0.0
        %657 = vmatmul.mubr.f32.gmra.mrb[0].mxu0 %v491
        %v658 = vpop.f32.mrb[0].mxu0
        %v659 = vadd.f32 %v478, %v658
        %v660 = vpop.f32.mrb[0].mxu0
        %661 = vmatprep.mubr.f32.mxu0 0.0
        %662 = vmatmul.mubr.f32.gmra.mrb[0].mxu0 %v494
        %v663 = vpop.f32.mrb[0].mxu0
        %v664 = vadd.f32 %v478, %v663
        %v665 = vpop.f32.mrb[0].mxu0
        %666 = vmatprep.mubr.f32.mxu0 0.0
        %667 = vmatmul.mubr.f32.gmra.mrb[0].mxu0 %v497
        %v668 = vpop.f32.mrb[0].mxu0
        %v669 = vadd.f32 %v478, %v668
        %v670 = vpop.f32.mrb[0].mxu0
        %671 = vmatprep.mubr.f32.mxu0 0.0
        %672 = vmatmul.mubr.f32.gmra.mrb[0].mxu0 %v500
        %v673 = vpop.f32.mrb[0].mxu0
        %v674 = vadd.f32 %v478, %v673
        %v675 = vpop.f32.mrb[0].mxu0
        %676 = vmatprep.mubr.f32.mxu0 0.0
        %677 = vmatmul.mubr.f32.gmra.mrb[0].mxu0 %v503
        %v678 = vpop.f32.mrb[0].mxu0
        %v679 = vadd.f32 %v478, %v678
        %v680 = vpop.f32.mrb[0].mxu0
        %681 = vmatprep.mubr.f32.mxu0 0.0
        %682 = vmatmul.mubr.f32.gmra.mrb[0].mxu0 %v506
        %v683 = vpop.f32.mrb[0].mxu0
        %v684 = vadd.f32 %v478, %v683
        %v685 = vpop.f32.mrb[0].mxu0
        %686 = vmatprep.mubr.f32.mxu0 0.0
        %687 = vmatmul.mubr.f32.gmra.mrb[0].mxu0 %v509
        %v688 = vpop.f32.mrb[0].mxu0
        %v689 = vadd.f32 %v478, %v688
        %v690 = vpop.f32.mrb[0].mxu0
        %691 = vmatprep.mubr.f32.mxu0 0.0
        %692 = vmatmul.mubr.f32.gmra.mrb[0].mxu0 %v512
        %v693 = vpop.f32.mrb[0].mxu0
        %v694 = vadd.f32 %v478, %v693
        %v695 = vpop.f32.mrb[0].mxu0
        %696 = vmatprep.mubr.f32.mxu0 0.0
        %697 = vmatmul.mubr.f32.gmra.mrb[0].mxu0 %v515
        %v698 = vpop.f32.mrb[0].mxu0
        %v699 = vadd.f32 %v478, %v698
        %v700 = vpop.f32.mrb[0].mxu0
        %701 = vmatprep.mubr.f32.mxu0 0.0
        %702 = vmatmul.mubr.f32.gmra.mrb[0].mxu0 %v518
        %v703 = vpop.f32.mrb[0].mxu0
        %v704 = vadd.f32 %v478, %v703
        %v705 = vpop.f32.mrb[0].mxu0
        %706 = vmatprep.mubr.f32.mxu0 0.0
        %707 = vmatmul.mubr.f32.gmra.mrb[0].mxu0 %v521
        %v708 = vpop.f32.mrb[0].mxu0
        %v709 = vadd.f32 %v478, %v708
        %v710 = vpop.f32.mrb[0].mxu0
        %711 = vmatprep.mubr.f32.mxu0 0.0
        %712 = vmatmul.mubr.f32.gmra.mrb[0].mxu0 %v524
        %v713 = vpop.f32.mrb[0].mxu0
        %v714 = vadd.f32 %v478, %v713
        %v715 = vpop.f32.mrb[0].mxu0
        %716 = vmatprep.mubr.f32.mxu0 0.0
        %717 = vmatmul.mubr.f32.gmra.mrb[0].mxu0 %v527
        %v718 = vpop.f32.mrb[0].mxu0
        %v719 = vadd.f32 %v478, %v718
        %v720 = vpop.f32.mrb[0].mxu0
        %721 = vmatprep.mubr.f32.mxu0 0.0
        %722 = vmatmul.mubr.f32.gmra.mrb[0].mxu0 %v530
        %v723 = vpop.f32.mrb[0].mxu0
        %v724 = vadd.f32 %v478, %v723
        %v725 = vpop.f32.mrb[0].mxu0
        %726 = vmatprep.mubr.f32.mxu0 0.0
        %727 = vmatmul.mubr.f32.gmra.mrb[0].mxu0 %v533
        %v728 = vpop.f32.mrb[0].mxu0
        %v729 = vadd.f32 %v478, %v728
        %v730 = vpop.f32.mrb[0].mxu0
        %731 = vmatprep.mubr.f32.mxu0 0.0
        %732 = vmatmul.mubr.f32.gmra.mrb[0].mxu0 %v536
        %v733 = vpop.f32.mrb[0].mxu0
        %v734 = vadd.f32 %v478, %v733
        %v735 = vpop.f32.mrb[0].mxu0
        %736 = vmatprep.mubr.f32.mxu0 0.0
        %737 = vmatmul.mubr.f32.gmra.mrb[0].mxu0 %v539
        %v738 = vpop.f32.mrb[0].mxu0
        %v739 = vadd.f32 %v478, %v738
        %v740 = vpop.f32.mrb[0].mxu0
        %741 = vmatprep.mubr.f32.mxu0 0.0
        %742 = vmatmul.mubr.f32.gmra.mrb[0].mxu0 %v542
        %v743 = vpop.f32.mrb[0].mxu0
        %v744 = vadd.f32 %v478, %v743
        %v745 = vpop.f32.mrb[0].mxu0
        %746 = vmatprep.mubr.f32.mxu0 0.0
        %747 = vmatmul.mubr.f32.gmra.mrb[0].mxu0 %v545
        %v748 = vpop.f32.mrb[0].mxu0
        %v749 = vadd.f32 %v478, %v748
        %v750 = vpop.f32.mrb[0].mxu0
        %751 = vmatprep.mubr.f32.mxu0 0.0
        %752 = vmatmul.mubr.f32.gmra.mrb[0].mxu0 %v548
        %v753 = vpop.f32.mrb[0].mxu0
        %v754 = vadd.f32 %v478, %v753
        %v755 = vpop.f32.mrb[0].mxu0
        %756 = vmatprep.mubr.f32.mxu0 0.0
        %757 = vmatmul.mubr.f32.gmra.mrb[0].mxu0 %v551
        %v758 = vpop.f32.mrb[0].mxu0
        %v759 = vadd.f32 %v478, %v758
        %v760 = vpop.f32.mrb[0].mxu0
        %761 = vmatprep.mubr.f32.mxu0 0.0
        %762 = vmatmul.mubr.f32.gmra.mrb[0].mxu0 %v554
        %v763 = vpop.f32.mrb[0].mxu0
        %v764 = vadd.f32 %v478, %v763
        %v765 = vpop.f32.mrb[0].mxu0
        %766 = vmatprep.mubr.f32.mxu0 0.0
        %767 = vmatmul.mubr.f32.gmra.mrb[0].mxu0 %v557
        %v768 = vpop.f32.mrb[0].mxu0
        %v769 = vadd.f32 %v478, %v768
        %v770 = vpop.f32.mrb[0].mxu0
        %771 = vmatprep.mubr.f32.mxu0 0.0
        %772 = vmatmul.mubr.f32.gmra.mrb[0].mxu0 %v560
        %v773 = vpop.f32.mrb[0].mxu0
        %v774 = vadd.f32 %v478, %v773
        %v775 = vpop.f32.mrb[0].mxu0
        %776 = vmatprep.mubr.f32.mxu0 0.0
        %777 = vmatmul.mubr.f32.gmra.mrb[0].mxu0 %v563
        %v778 = vpop.f32.mrb[0].mxu0
        %v779 = vadd.f32 %v478, %v778
        %v780 = vpop.f32.mrb[0].mxu0
        %781 = vmatprep.mubr.f32.mxu0 0.0
        %782 = vmatmul.mubr.f32.gmra.mrb[0].mxu0 %v566
        %v783 = vpop.f32.mrb[0].mxu0
        %v784 = vadd.f32 %v478, %v783
        %v785 = vpop.f32.mrb[0].mxu0
        %786 = vmatprep.mubr.f32.mxu0 0.0
        %787 = vmatmul.mubr.f32.gmra.mrb[0].mxu0 %v569
        %v788 = vpop.f32.mrb[0].mxu0
        %v789 = vadd.f32 %v478, %v788
        %v790 = vpop.f32.mrb[0].mxu0
        %791 = vmatprep.mubr.f32.mxu0 0.0
        %792 = vmatmul.mubr.f32.gmra.mrb[0].mxu0 %v572
        %v793 = vpop.f32.mrb[0].mxu0
        %v794 = vadd.f32 %v478, %v793
        %v795 = vpop.f32.mrb[0].mxu0
        %796 = vmatprep.mubr.f32.mxu0 0.0
        %797 = vmatmul.mubr.f32.gmra.mrb[0].mxu0 %v575
        %v798 = vpop.f32.mrb[0].mxu0
        %v799 = vadd.f32 %v478, %v798
        %v800 = vpop.f32.mrb[0].mxu0
        %801 = vdwg.mxu0
        %v802 = vmul.f32 %v644, 0.5
        %v803 = vmul.f32 %v649, 0.5
        %v804 = vmul.f32 %v654, 0.5
        %v805 = vmul.f32 %v659, 0.5
        %v806 = vmul.f32 %v664, 0.5
        %v807 = vmul.f32 %v669, 0.5
        %v808 = vmul.f32 %v674, 0.5
        %v809 = vmul.f32 %v679, 0.5
        %v810 = vmul.f32 %v684, 0.5
        %v811 = vmul.f32 %v689, 0.5
        %v812 = vmul.f32 %v694, 0.5
        %v813 = vmul.f32 %v699, 0.5
        %v814 = vmul.f32 %v704, 0.5
        %v815 = vmul.f32 %v709, 0.5
        %v816 = vmul.f32 %v714, 0.5
        %v817 = vmul.f32 %v719, 0.5
        %v818 = vmul.f32 %v724, 0.5
        %v819 = vmul.f32 %v729, 0.5
        %v820 = vmul.f32 %v734, 0.5
        %v821 = vmul.f32 %v739, 0.5
        %v822 = vmul.f32 %v744, 0.5
        %v823 = vmul.f32 %v749, 0.5
        %v824 = vmul.f32 %v754, 0.5
        %v825 = vmul.f32 %v759, 0.5
        %v826 = vmul.f32 %v764, 0.5
        %v827 = vmul.f32 %v769, 0.5
        %v828 = vmul.f32 %v774, 0.5
        %v829 = vmul.f32 %v779, 0.5
        %v830 = vmul.f32 %v784, 0.5
        %v831 = vmul.f32 %v789, 0.5
        %v832 = vmul.f32 %v794, 0.5
        %v833 = vmul.f32 %v799, 0.5
        %v834 = vmul.f32 %v644, 0.70710677
        %v835 = vmul.f32 %v649, 0.70710677
        %v836 = vmul.f32 %v654, 0.70710677
        %v837 = vmul.f32 %v659, 0.70710677
        %v838 = vmul.f32 %v664, 0.70710677
        %v839 = vmul.f32 %v669, 0.70710677
        %v840 = vmul.f32 %v674, 0.70710677
        %v841 = vmul.f32 %v679, 0.70710677
        %v842 = vmul.f32 %v684, 0.70710677
        %v843 = vmul.f32 %v689, 0.70710677
        %v844 = vmul.f32 %v694, 0.70710677
        %v845 = vmul.f32 %v699, 0.70710677
        %v846 = vmul.f32 %v704, 0.70710677
        %v847 = vmul.f32 %v709, 0.70710677
        %v848 = vmul.f32 %v714, 0.70710677
        %v849 = vmul.f32 %v719, 0.70710677
        %v850 = vmul.f32 %v724, 0.70710677
        %v851 = vmul.f32 %v729, 0.70710677
        %v852 = vmul.f32 %v734, 0.70710677
        %v853 = vmul.f32 %v739, 0.70710677
        %v854 = vmul.f32 %v744, 0.70710677
        %v855 = vmul.f32 %v749, 0.70710677
        %v856 = vmul.f32 %v754, 0.70710677
        %v857 = vmul.f32 %v759, 0.70710677
        %v858 = vmul.f32 %v764, 0.70710677
        %v859 = vmul.f32 %v769, 0.70710677
        %v860 = vmul.f32 %v774, 0.70710677
        %v861 = vmul.f32 %v779, 0.70710677
        %v862 = vmul.f32 %v784, 0.70710677
        %v863 = vmul.f32 %v789, 0.70710677
        %v864 = vmul.f32 %v794, 0.70710677
        %v865 = vmul.f32 %v799, 0.70710677
        %v866 = verf.f32.pop %v834
        %v867 = verf.f32.pop %v835
        %v868 = verf.f32.pop %v836
        %v869 = verf.f32.pop %v837
        %v870 = verf.f32.pop %v838
        %v871 = verf.f32.pop %v839
        %v872 = verf.f32.pop %v840
        %v873 = verf.f32.pop %v841
        %v874 = verf.f32.pop %v842
        %v875 = verf.f32.pop %v843
        %v876 = verf.f32.pop %v844
        %v877 = verf.f32.pop %v845
        %v878 = verf.f32.pop %v846
        %v879 = verf.f32.pop %v847
        %v880 = verf.f32.pop %v848
        %v881 = verf.f32.pop %v849
        %v882 = verf.f32.pop %v850
        %v883 = verf.f32.pop %v851
        %v884 = verf.f32.pop %v852
        %v885 = verf.f32.pop %v853
        %v886 = verf.f32.pop %v854
        %v887 = verf.f32.pop %v855
        %v888 = verf.f32.pop %v856
        %v889 = verf.f32.pop %v857
        %v890 = verf.f32.pop %v858
        %v891 = verf.f32.pop %v859
        %v892 = verf.f32.pop %v860
        %v893 = verf.f32.pop %v861
        %v894 = verf.f32.pop %v862
        %v895 = verf.f32.pop %v863
        %v896 = verf.f32.pop %v864
        %v897 = verf.f32.pop %v865
        %v898 = vadd.f32 %v866, 1.0
        %v899 = vadd.f32 %v867, 1.0
        %v900 = vadd.f32 %v868, 1.0
        %v901 = vadd.f32 %v869, 1.0
        %v902 = vadd.f32 %v870, 1.0
        %v903 = vadd.f32 %v871, 1.0
        %v904 = vadd.f32 %v872, 1.0
        %v905 = vadd.f32 %v873, 1.0
        %v906 = vadd.f32 %v874, 1.0
        %v907 = vadd.f32 %v875, 1.0
        %v908 = vadd.f32 %v876, 1.0
        %v909 = vadd.f32 %v877, 1.0
        %v910 = vadd.f32 %v878, 1.0
        %v911 = vadd.f32 %v879, 1.0
        %v912 = vadd.f32 %v880, 1.0
        %v913 = vadd.f32 %v881, 1.0
        %v914 = vadd.f32 %v882, 1.0
        %v915 = vadd.f32 %v883, 1.0
        %v916 = vadd.f32 %v884, 1.0
        %v917 = vadd.f32 %v885, 1.0
        %v918 = vadd.f32 %v886, 1.0
        %v919 = vadd.f32 %v887, 1.0
        %v920 = vadd.f32 %v888, 1.0
        %v921 = vadd.f32 %v889, 1.0
        %v922 = vadd.f32 %v890, 1.0
        %v923 = vadd.f32 %v891, 1.0
        %v924 = vadd.f32 %v892, 1.0
        %v925 = vadd.f32 %v893, 1.0
        %v926 = vadd.f32 %v894, 1.0
        %v927 = vadd.f32 %v895, 1.0
        %v928 = vadd.f32 %v896, 1.0
        %v929 = vadd.f32 %v897, 1.0
        %v930 = vmul.f32 %v802, %v898
        %v931 = vmul.f32 %v803, %v899
        %v932 = vmul.f32 %v804, %v900
        %v933 = vmul.f32 %v805, %v901
        %v934 = vmul.f32 %v806, %v902
        %v935 = vmul.f32 %v807, %v903
        %v936 = vmul.f32 %v808, %v904
        %v937 = vmul.f32 %v809, %v905
        %v938 = vmul.f32 %v810, %v906
        %v939 = vmul.f32 %v811, %v907
        %v940 = vmul.f32 %v812, %v908
        %v941 = vmul.f32 %v813, %v909
        %v942 = vmul.f32 %v814, %v910
        %v943 = vmul.f32 %v815, %v911
        %v944 = vmul.f32 %v816, %v912
        %v945 = vmul.f32 %v817, %v913
        %v946 = vmul.f32 %v818, %v914
        %v947 = vmul.f32 %v819, %v915
        %v948 = vmul.f32 %v820, %v916
        %v949 = vmul.f32 %v821, %v917
        %v950 = vmul.f32 %v822, %v918
        %v951 = vmul.f32 %v823, %v919
        %v952 = vmul.f32 %v824, %v920
        %v953 = vmul.f32 %v825, %v921
        %v954 = vmul.f32 %v826, %v922
        %v955 = vmul.f32 %v827, %v923
        %v956 = vmul.f32 %v828, %v924
        %v957 = vmul.f32 %v829, %v925
        %v958 = vmul.f32 %v830, %v926
        %v959 = vmul.f32 %v831, %v927
        %v960 = vmul.f32 %v832, %v928
        %v961 = vmul.f32 %v833, %v929
        %v962 = vpack.c.bf16 %v931, %v930
        %v963 = vpack.c.bf16 %v933, %v932
        %v964 = vpack.c.bf16 %v935, %v934
        %v965 = vpack.c.bf16 %v937, %v936
        %v966 = vpack.c.bf16 %v939, %v938
        %v967 = vpack.c.bf16 %v941, %v940
        %v968 = vpack.c.bf16 %v943, %v942
        %v969 = vpack.c.bf16 %v945, %v944
        %v970 = vpack.c.bf16 %v947, %v946
        %v971 = vpack.c.bf16 %v949, %v948
        %v972 = vpack.c.bf16 %v951, %v950
        %v973 = vpack.c.bf16 %v953, %v952
        %v974 = vpack.c.bf16 %v955, %v954
        %v975 = vpack.c.bf16 %v957, %v956
        %v976 = vpack.c.bf16 %v959, %v958
        %v977 = vpack.c.bf16 %v961, %v960
        %v978 = vld [vmem:[#allocation7] sm:$0xf]
        %v979 = vld [vmem:[#allocation7 + $0x4] sm:$0xf]
        %v980 = vld [vmem:[#allocation7 + $0x8] sm:$0xf]
        %v981 = vld [vmem:[#allocation7 + $0xc] sm:$0xf]
        %v982 = vld [vmem:[#allocation7 + $0x10] sm:$0xf]
        %v983 = vld [vmem:[#allocation7 + $0x14] sm:$0xf]
        %v984 = vld [vmem:[#allocation7 + $0x18] sm:$0xf]
        %v985 = vld [vmem:[#allocation7 + $0x1c] sm:$0xf]
        %v986 = vld [vmem:[%s4] sm:$0x1]
        %v988 = vlaneseq
        %v989 = vshrl.u32 %v988, 7
        %v990 = vsub.s32 0, %v989
        %v991 = vrot.slane %v986, %v990
        %v1001 = vunpack.c.l.b16 %v978
        %v1002 = vunpack.c.l.b16 %v979
        %v1003 = vunpack.c.l.b16 %v980
        %v1004 = vunpack.c.l.b16 %v981
        %v1005 = vunpack.c.l.b16 %v982
        %v1006 = vunpack.c.l.b16 %v983
        %v1007 = vunpack.c.l.b16 %v984
        %v1008 = vunpack.c.l.b16 %v985
        %v1009 = vpack.c.b16 %v1002, %v1001
        %v1010 = vpack.c.b16 %v1004, %v1003
        %v1011 = vpack.c.b16 %v1006, %v1005
        %v1012 = vpack.c.b16 %v1008, %v1007
        %vm1017 = vcmask 523264
        %v1019 = vsel %vm1017, %v962, 0
        %v1022 = vsel %vm1017, %v963, 0
        %v1025 = vsel %vm1017, %v964, 0
        %v1028 = vsel %vm1017, %v965, 0
        %v1031 = vsel %vm1017, %v966, 0
        %v1034 = vsel %vm1017, %v967, 0
        %v1037 = vsel %vm1017, %v968, 0
        %v1040 = vsel %vm1017, %v969, 0
        %v1043 = vsel %vm1017, %v970, 0
        %v1046 = vsel %vm1017, %v971, 0
        %v1049 = vsel %vm1017, %v972, 0
        %v1052 = vsel %vm1017, %v973, 0
        %v1055 = vsel %vm1017, %v974, 0
        %v1058 = vsel %vm1017, %v975, 0
        %v1061 = vsel %vm1017, %v976, 0
        %v1064 = vsel %vm1017, %v977, 0
        %1066 = vmatprep.subr.bf16.mxu0 0
        %1067 = vmatpush1.bf16.msra.mxu0 %v1009
        %1068 = vmatprep.subr.bf16.mxu0 0
        %1069 = vmatpush1.bf16.msra.mxu0 %v1010
        %1070 = vmatprep.subr.bf16.mxu0 0
        %1071 = vmatpush1.bf16.msra.mxu0 %v1011
        %1072 = vmatprep.subr.bf16.mxu0 0
        %1073 = vmatpush1.bf16.msra.mxu0 %v1012
        %1074 = vmatprep.subr.bf16.mxu0 0
        %1075 = vmatpush1.bf16.msra.mxu0 0
        %1076 = vmatprep.subr.bf16.mxu0 0
        %1077 = vmatpush1.bf16.msra.mxu0 0
        %1078 = vmatprep.subr.bf16.mxu0 0
        %1079 = vmatpush1.bf16.msra.mxu0 0
        %1080 = vmatprep.subr.bf16.mxu0 0
        %1081 = vmatpush1.bf16.msra.mxu0 0
        %1082 = vmatprep.subr.bf16.mxu0 0
        %1083 = vmatpush1.bf16.msra.mxu0 0
        %1084 = vmatprep.subr.bf16.mxu0 0
        %1085 = vmatpush1.bf16.msra.mxu0 0
        %1086 = vmatprep.subr.bf16.mxu0 0
        %1087 = vmatpush1.bf16.msra.mxu0 0
        %1088 = vmatprep.subr.bf16.mxu0 0
        %1089 = vmatpush1.bf16.msra.mxu0 0
        %1090 = vmatprep.subr.bf16.mxu0 0
        %1091 = vmatpush1.bf16.msra.mxu0 0
        %1092 = vmatprep.subr.bf16.mxu0 0
        %1093 = vmatpush1.bf16.msra.mxu0 0
        %1094 = vmatprep.subr.bf16.mxu0 0
        %1095 = vmatpush1.bf16.msra.mxu0 0
        %1096 = vmatprep.subr.bf16.mxu0 0
        %1097 = vmatpush1.bf16.msra.mxu0 0
        %1098 = vmatprep.mubr.bf16.mxu0 0
        %1099 = vmatmul.mubr.bf16.gmra.mrb[0].mxu0 %v1019
        %v1100 = vpop.f32.mrb[0].mxu0
        %v1101 = vadd.f32 %v991, %v1100
        %v1102 = vpop.f32.mrb[0].mxu0
        %v1103 = vpop.f32.mrb[0].mxu0
        %v1104 = vadd.f32 %v991, %v1103
        %v1105 = vpop.f32.mrb[0].mxu0
        %1106 = vmatprep.mubr.bf16.mxu0 0
        %1107 = vmatmul.mubr.bf16.gmra.mrb[0].mxu0 %v1022
        %v1108 = vpop.f32.mrb[0].mxu0
        %v1109 = vadd.f32 %v991, %v1108
        %v1110 = vpop.f32.mrb[0].mxu0
        %v1111 = vpop.f32.mrb[0].mxu0
        %v1112 = vadd.f32 %v991, %v1111
        %v1113 = vpop.f32.mrb[0].mxu0
        %1114 = vmatprep.mubr.bf16.mxu0 0
        %1115 = vmatmul.mubr.bf16.gmra.mrb[0].mxu0 %v1025
        %v1116 = vpop.f32.mrb[0].mxu0
        %v1117 = vadd.f32 %v991, %v1116
        %v1118 = vpop.f32.mrb[0].mxu0
        %v1119 = vpop.f32.mrb[0].mxu0
        %v1120 = vadd.f32 %v991, %v1119
        %v1121 = vpop.f32.mrb[0].mxu0
        %1122 = vmatprep.mubr.bf16.mxu0 0
        %1123 = vmatmul.mubr.bf16.gmra.mrb[0].mxu0 %v1028
        %v1124 = vpop.f32.mrb[0].mxu0
        %v1125 = vadd.f32 %v991, %v1124
        %v1126 = vpop.f32.mrb[0].mxu0
        %v1127 = vpop.f32.mrb[0].mxu0
        %v1128 = vadd.f32 %v991, %v1127
        %v1129 = vpop.f32.mrb[0].mxu0
        %1130 = vmatprep.mubr.bf16.mxu0 0
        %1131 = vmatmul.mubr.bf16.gmra.mrb[0].mxu0 %v1031
        %v1132 = vpop.f32.mrb[0].mxu0
        %v1133 = vadd.f32 %v991, %v1132
        %v1134 = vpop.f32.mrb[0].mxu0
        %v1135 = vpop.f32.mrb[0].mxu0
        %v1136 = vadd.f32 %v991, %v1135
        %v1137 = vpop.f32.mrb[0].mxu0
        %1138 = vmatprep.mubr.bf16.mxu0 0
        %1139 = vmatmul.mubr.bf16.gmra.mrb[0].mxu0 %v1034
        %v1140 = vpop.f32.mrb[0].mxu0
        %v1141 = vadd.f32 %v991, %v1140
        %v1142 = vpop.f32.mrb[0].mxu0
        %v1143 = vpop.f32.mrb[0].mxu0
        %v1144 = vadd.f32 %v991, %v1143
        %v1145 = vpop.f32.mrb[0].mxu0
        %1146 = vmatprep.mubr.bf16.mxu0 0
        %1147 = vmatmul.mubr.bf16.gmra.mrb[0].mxu0 %v1037
        %v1148 = vpop.f32.mrb[0].mxu0
        %v1149 = vadd.f32 %v991, %v1148
        %v1150 = vpop.f32.mrb[0].mxu0
        %v1151 = vpop.f32.mrb[0].mxu0
        %v1152 = vadd.f32 %v991, %v1151
        %v1153 = vpop.f32.mrb[0].mxu0
        %1154 = vmatprep.mubr.bf16.mxu0 0
        %1155 = vmatmul.mubr.bf16.gmra.mrb[0].mxu0 %v1040
        %v1156 = vpop.f32.mrb[0].mxu0
        %v1157 = vadd.f32 %v991, %v1156
        %v1158 = vpop.f32.mrb[0].mxu0
        %v1159 = vpop.f32.mrb[0].mxu0
        %v1160 = vadd.f32 %v991, %v1159
        %v1161 = vpop.f32.mrb[0].mxu0
        %1162 = vmatprep.mubr.bf16.mxu0 0
        %1163 = vmatmul.mubr.bf16.gmra.mrb[0].mxu0 %v1043
        %v1164 = vpop.f32.mrb[0].mxu0
        %v1165 = vadd.f32 %v991, %v1164
        %v1166 = vpop.f32.mrb[0].mxu0
        %v1167 = vpop.f32.mrb[0].mxu0
        %v1168 = vadd.f32 %v991, %v1167
        %v1169 = vpop.f32.mrb[0].mxu0
        %1170 = vmatprep.mubr.bf16.mxu0 0
        %1171 = vmatmul.mubr.bf16.gmra.mrb[0].mxu0 %v1046
        %v1172 = vpop.f32.mrb[0].mxu0
        %v1173 = vadd.f32 %v991, %v1172
        %v1174 = vpop.f32.mrb[0].mxu0
        %v1175 = vpop.f32.mrb[0].mxu0
        %v1176 = vadd.f32 %v991, %v1175
        %v1177 = vpop.f32.mrb[0].mxu0
        %1178 = vmatprep.mubr.bf16.mxu0 0
        %1179 = vmatmul.mubr.bf16.gmra.mrb[0].mxu0 %v1049
        %v1180 = vpop.f32.mrb[0].mxu0
        %v1181 = vadd.f32 %v991, %v1180
        %v1182 = vpop.f32.mrb[0].mxu0
        %v1183 = vpop.f32.mrb[0].mxu0
        %v1184 = vadd.f32 %v991, %v1183
        %v1185 = vpop.f32.mrb[0].mxu0
        %1186 = vmatprep.mubr.bf16.mxu0 0
        %1187 = vmatmul.mubr.bf16.gmra.mrb[0].mxu0 %v1052
        %v1188 = vpop.f32.mrb[0].mxu0
        %v1189 = vadd.f32 %v991, %v1188
        %v1190 = vpop.f32.mrb[0].mxu0
        %v1191 = vpop.f32.mrb[0].mxu0
        %v1192 = vadd.f32 %v991, %v1191
        %v1193 = vpop.f32.mrb[0].mxu0
        %1194 = vmatprep.mubr.bf16.mxu0 0
        %1195 = vmatmul.mubr.bf16.gmra.mrb[0].mxu0 %v1055
        %v1196 = vpop.f32.mrb[0].mxu0
        %v1197 = vadd.f32 %v991, %v1196
        %v1198 = vpop.f32.mrb[0].mxu0
        %v1199 = vpop.f32.mrb[0].mxu0
        %v1200 = vadd.f32 %v991, %v1199
        %v1201 = vpop.f32.mrb[0].mxu0
        %1202 = vmatprep.mubr.bf16.mxu0 0
        %1203 = vmatmul.mubr.bf16.gmra.mrb[0].mxu0 %v1058
        %v1204 = vpop.f32.mrb[0].mxu0
        %v1205 = vadd.f32 %v991, %v1204
        %v1206 = vpop.f32.mrb[0].mxu0
        %v1207 = vpop.f32.mrb[0].mxu0
        %v1208 = vadd.f32 %v991, %v1207
        %v1209 = vpop.f32.mrb[0].mxu0
        %1210 = vmatprep.mubr.bf16.mxu0 0
        %1211 = vmatmul.mubr.bf16.gmra.mrb[0].mxu0 %v1061
        %v1212 = vpop.f32.mrb[0].mxu0
        %v1213 = vadd.f32 %v991, %v1212
        %v1214 = vpop.f32.mrb[0].mxu0
        %v1215 = vpop.f32.mrb[0].mxu0
        %v1216 = vadd.f32 %v991, %v1215
        %v1217 = vpop.f32.mrb[0].mxu0
        %1218 = vmatprep.mubr.bf16.mxu0 0
        %1219 = vmatmul.mubr.bf16.gmra.mrb[0].mxu0 %v1064
        %v1220 = vpop.f32.mrb[0].mxu0
        %v1221 = vadd.f32 %v991, %v1220
        %v1222 = vpop.f32.mrb[0].mxu0
        %v1223 = vpop.f32.mrb[0].mxu0
        %v1224 = vadd.f32 %v991, %v1223
        %v1225 = vpop.f32.mrb[0].mxu0
        %1226 = vdwg.mxu0
        %v1227 = vmul.f32 %v1101, 0.5
        %v1228 = vmul.f32 %v1104, 0.5
        %v1229 = vmul.f32 %v1109, 0.5
        %v1230 = vmul.f32 %v1112, 0.5
        %v1231 = vmul.f32 %v1117, 0.5
        %v1232 = vmul.f32 %v1120, 0.5
        %v1233 = vmul.f32 %v1125, 0.5
        %v1234 = vmul.f32 %v1128, 0.5
        %v1235 = vmul.f32 %v1133, 0.5
        %v1236 = vmul.f32 %v1136, 0.5
        %v1237 = vmul.f32 %v1141, 0.5
        %v1238 = vmul.f32 %v1144, 0.5
        %v1239 = vmul.f32 %v1149, 0.5
        %v1240 = vmul.f32 %v1152, 0.5
        %v1241 = vmul.f32 %v1157, 0.5
        %v1242 = vmul.f32 %v1160, 0.5
        %v1243 = vmul.f32 %v1165, 0.5
        %v1244 = vmul.f32 %v1168, 0.5
        %v1245 = vmul.f32 %v1173, 0.5
        %v1246 = vmul.f32 %v1176, 0.5
        %v1247 = vmul.f32 %v1181, 0.5
        %v1248 = vmul.f32 %v1184, 0.5
        %v1249 = vmul.f32 %v1189, 0.5
        %v1250 = vmul.f32 %v1192, 0.5
        %v1251 = vmul.f32 %v1197, 0.5
        %v1252 = vmul.f32 %v1200, 0.5
        %v1253 = vmul.f32 %v1205, 0.5
        %v1254 = vmul.f32 %v1208, 0.5
        %v1255 = vmul.f32 %v1213, 0.5
        %v1256 = vmul.f32 %v1216, 0.5
        %v1257 = vmul.f32 %v1221, 0.5
        %v1258 = vmul.f32 %v1224, 0.5
        %v1259 = vmul.f32 %v1101, 0.70710677
        %v1260 = vmul.f32 %v1104, 0.70710677
        %v1261 = vmul.f32 %v1109, 0.70710677
        %v1262 = vmul.f32 %v1112, 0.70710677
        %v1263 = vmul.f32 %v1117, 0.70710677
        %v1264 = vmul.f32 %v1120, 0.70710677
        %v1265 = vmul.f32 %v1125, 0.70710677
        %v1266 = vmul.f32 %v1128, 0.70710677
        %v1267 = vmul.f32 %v1133, 0.70710677
        %v1268 = vmul.f32 %v1136, 0.70710677
        %v1269 = vmul.f32 %v1141, 0.70710677
        %v1270 = vmul.f32 %v1144, 0.70710677
        %v1271 = vmul.f32 %v1149, 0.70710677
        %v1272 = vmul.f32 %v1152, 0.70710677
        %v1273 = vmul.f32 %v1157, 0.70710677
        %v1274 = vmul.f32 %v1160, 0.70710677
        %v1275 = vmul.f32 %v1165, 0.70710677
        %v1276 = vmul.f32 %v1168, 0.70710677
        %v1277 = vmul.f32 %v1173, 0.70710677
        %v1278 = vmul.f32 %v1176, 0.70710677
        %v1279 = vmul.f32 %v1181, 0.70710677
        %v1280 = vmul.f32 %v1184, 0.70710677
        %v1281 = vmul.f32 %v1189, 0.70710677
        %v1282 = vmul.f32 %v1192, 0.70710677
        %v1283 = vmul.f32 %v1197, 0.70710677
        %v1284 = vmul.f32 %v1200, 0.70710677
        %v1285 = vmul.f32 %v1205, 0.70710677
        %v1286 = vmul.f32 %v1208, 0.70710677
        %v1287 = vmul.f32 %v1213, 0.70710677
        %v1288 = vmul.f32 %v1216, 0.70710677
        %v1289 = vmul.f32 %v1221, 0.70710677
        %v1290 = vmul.f32 %v1224, 0.70710677
        %v1291 = verf.f32.pop %v1259
        %v1292 = verf.f32.pop %v1260
        %v1293 = verf.f32.pop %v1261
        %v1294 = verf.f32.pop %v1262
        %v1295 = verf.f32.pop %v1263
        %v1296 = verf.f32.pop %v1264
        %v1297 = verf.f32.pop %v1265
        %v1298 = verf.f32.pop %v1266
        %v1299 = verf.f32.pop %v1267
        %v1300 = verf.f32.pop %v1268
        %v1301 = verf.f32.pop %v1269
        %v1302 = verf.f32.pop %v1270
        %v1303 = verf.f32.pop %v1271
        %v1304 = verf.f32.pop %v1272
        %v1305 = verf.f32.pop %v1273
        %v1306 = verf.f32.pop %v1274
        %v1307 = verf.f32.pop %v1275
        %v1308 = verf.f32.pop %v1276
        %v1309 = verf.f32.pop %v1277
        %v1310 = verf.f32.pop %v1278
        %v1311 = verf.f32.pop %v1279
        %v1312 = verf.f32.pop %v1280
        %v1313 = verf.f32.pop %v1281
        %v1314 = verf.f32.pop %v1282
        %v1315 = verf.f32.pop %v1283
        %v1316 = verf.f32.pop %v1284
        %v1317 = verf.f32.pop %v1285
        %v1318 = verf.f32.pop %v1286
        %v1319 = verf.f32.pop %v1287
        %v1320 = verf.f32.pop %v1288
        %v1321 = verf.f32.pop %v1289
        %v1322 = verf.f32.pop %v1290
        %v1323 = vadd.f32 %v1291, 1.0
        %v1324 = vadd.f32 %v1292, 1.0
        %v1325 = vadd.f32 %v1293, 1.0
        %v1326 = vadd.f32 %v1294, 1.0
        %v1327 = vadd.f32 %v1295, 1.0
        %v1328 = vadd.f32 %v1296, 1.0
        %v1329 = vadd.f32 %v1297, 1.0
        %v1330 = vadd.f32 %v1298, 1.0
        %v1331 = vadd.f32 %v1299, 1.0
        %v1332 = vadd.f32 %v1300, 1.0
        %v1333 = vadd.f32 %v1301, 1.0
        %v1334 = vadd.f32 %v1302, 1.0
        %v1335 = vadd.f32 %v1303, 1.0
        %v1336 = vadd.f32 %v1304, 1.0
        %v1337 = vadd.f32 %v1305, 1.0
        %v1338 = vadd.f32 %v1306, 1.0
        %v1339 = vadd.f32 %v1307, 1.0
        %v1340 = vadd.f32 %v1308, 1.0
        %v1341 = vadd.f32 %v1309, 1.0
        %v1342 = vadd.f32 %v1310, 1.0
        %v1343 = vadd.f32 %v1311, 1.0
        %v1344 = vadd.f32 %v1312, 1.0
        %v1345 = vadd.f32 %v1313, 1.0
        %v1346 = vadd.f32 %v1314, 1.0
        %v1347 = vadd.f32 %v1315, 1.0
        %v1348 = vadd.f32 %v1316, 1.0
        %v1349 = vadd.f32 %v1317, 1.0
        %v1350 = vadd.f32 %v1318, 1.0
        %v1351 = vadd.f32 %v1319, 1.0
        %v1352 = vadd.f32 %v1320, 1.0
        %v1353 = vadd.f32 %v1321, 1.0
        %v1354 = vadd.f32 %v1322, 1.0
        %v1355 = vmul.f32 %v1227, %v1323
        %v1356 = vmul.f32 %v1228, %v1324
        %v1357 = vmul.f32 %v1229, %v1325
        %v1358 = vmul.f32 %v1230, %v1326
        %v1359 = vmul.f32 %v1231, %v1327
        %v1360 = vmul.f32 %v1232, %v1328
        %v1361 = vmul.f32 %v1233, %v1329
        %v1362 = vmul.f32 %v1234, %v1330
        %v1363 = vmul.f32 %v1235, %v1331
        %v1364 = vmul.f32 %v1236, %v1332
        %v1365 = vmul.f32 %v1237, %v1333
        %v1366 = vmul.f32 %v1238, %v1334
        %v1367 = vmul.f32 %v1239, %v1335
        %v1368 = vmul.f32 %v1240, %v1336
        %v1369 = vmul.f32 %v1241, %v1337
        %v1370 = vmul.f32 %v1242, %v1338
        %v1371 = vmul.f32 %v1243, %v1339
        %v1372 = vmul.f32 %v1244, %v1340
        %v1373 = vmul.f32 %v1245, %v1341
        %v1374 = vmul.f32 %v1246, %v1342
        %v1375 = vmul.f32 %v1247, %v1343
        %v1376 = vmul.f32 %v1248, %v1344
        %v1377 = vmul.f32 %v1249, %v1345
        %v1378 = vmul.f32 %v1250, %v1346
        %v1379 = vmul.f32 %v1251, %v1347
        %v1380 = vmul.f32 %v1252, %v1348
        %v1381 = vmul.f32 %v1253, %v1349
        %v1382 = vmul.f32 %v1254, %v1350
        %v1383 = vmul.f32 %v1255, %v1351
        %v1384 = vmul.f32 %v1256, %v1352
        %v1385 = vmul.f32 %v1257, %v1353
        %v1386 = vmul.f32 %v1258, %v1354
        %v1387 = vpack.c.bf16 %v1356, %v1355
        %v1388 = vpack.c.bf16 %v1358, %v1357
        %v1389 = vpack.c.bf16 %v1360, %v1359
        %v1390 = vpack.c.bf16 %v1362, %v1361
        %v1391 = vpack.c.bf16 %v1364, %v1363
        %v1392 = vpack.c.bf16 %v1366, %v1365
        %v1393 = vpack.c.bf16 %v1368, %v1367
        %v1394 = vpack.c.bf16 %v1370, %v1369
        %v1395 = vpack.c.bf16 %v1372, %v1371
        %v1396 = vpack.c.bf16 %v1374, %v1373
        %v1397 = vpack.c.bf16 %v1376, %v1375
        %v1398 = vpack.c.bf16 %v1378, %v1377
        %v1399 = vpack.c.bf16 %v1380, %v1379
        %v1400 = vpack.c.bf16 %v1382, %v1381
        %v1401 = vpack.c.bf16 %v1384, %v1383
        %v1402 = vpack.c.bf16 %v1386, %v1385
        %v1403 = vld [vmem:[#allocation8] sm:$0xf]
        %v1404 = vld [vmem:[#allocation8 + $0x4] sm:$0xf]
        %v1405 = vld [vmem:[#allocation8 + $0x8] sm:$0xf]
        %v1406 = vld [vmem:[#allocation8 + $0xc] sm:$0xf]
        %v1407 = vld [vmem:[#allocation8 + $0x10] sm:$0xf]
        %v1408 = vld [vmem:[#allocation8 + $0x14] sm:$0xf]
        %v1409 = vld [vmem:[#allocation8 + $0x18] sm:$0xf]
        %v1410 = vld [vmem:[#allocation8 + $0x1c] sm:$0xf]
        %v1411 = vld [vmem:[%s6] sm:$0x1]
        %v1413 = vlaneseq
        %v1414 = vshrl.u32 %v1413, 7
        %v1415 = vsub.s32 0, %v1414
        %v1416 = vrot.slane %v1411, %v1415
        %v1426 = vunpack.c.l.b16 %v1403
        %v1427 = vunpack.c.l.b16 %v1404
        %v1428 = vunpack.c.l.b16 %v1405
        %v1429 = vunpack.c.l.b16 %v1406
        %v1430 = vunpack.c.l.b16 %v1407
        %v1431 = vunpack.c.l.b16 %v1408
        %v1432 = vunpack.c.l.b16 %v1409
        %v1433 = vunpack.c.l.b16 %v1410
        %v1434 = vpack.c.b16 %v1427, %v1426
        %v1435 = vpack.c.b16 %v1429, %v1428
        %v1436 = vpack.c.b16 %v1431, %v1430
        %v1437 = vpack.c.b16 %v1433, %v1432
        %v1443 = vsel %vm1017, %v1387, 0
        %v1446 = vsel %vm1017, %v1388, 0
        %v1449 = vsel %vm1017, %v1389, 0
        %v1452 = vsel %vm1017, %v1390, 0
        %v1455 = vsel %vm1017, %v1391, 0
        %v1458 = vsel %vm1017, %v1392, 0
        %v1461 = vsel %vm1017, %v1393, 0
        %v1464 = vsel %vm1017, %v1394, 0
        %v1467 = vsel %vm1017, %v1395, 0
        %v1470 = vsel %vm1017, %v1396, 0
        %v1473 = vsel %vm1017, %v1397, 0
        %v1476 = vsel %vm1017, %v1398, 0
        %v1479 = vsel %vm1017, %v1399, 0
        %v1482 = vsel %vm1017, %v1400, 0
        %v1485 = vsel %vm1017, %v1401, 0
        %v1488 = vsel %vm1017, %v1402, 0
        %1490 = vmatprep.subr.bf16.mxu0 0
        %1491 = vmatpush1.bf16.msra.mxu0 %v1434
        %1492 = vmatprep.subr.bf16.mxu0 0
        %1493 = vmatpush1.bf16.msra.mxu0 %v1435
        %1494 = vmatprep.subr.bf16.mxu0 0
        %1495 = vmatpush1.bf16.msra.mxu0 %v1436
        %1496 = vmatprep.subr.bf16.mxu0 0
        %1497 = vmatpush1.bf16.msra.mxu0 %v1437
        %1498 = vmatprep.subr.bf16.mxu0 0
        %1499 = vmatpush1.bf16.msra.mxu0 0
        %1500 = vmatprep.subr.bf16.mxu0 0
        %1501 = vmatpush1.bf16.msra.mxu0 0
        %1502 = vmatprep.subr.bf16.mxu0 0
        %1503 = vmatpush1.bf16.msra.mxu0 0
        %1504 = vmatprep.subr.bf16.mxu0 0
        %1505 = vmatpush1.bf16.msra.mxu0 0
        %1506 = vmatprep.subr.bf16.mxu0 0
        %1507 = vmatpush1.bf16.msra.mxu0 0
        %1508 = vmatprep.subr.bf16.mxu0 0
        %1509 = vmatpush1.bf16.msra.mxu0 0
        %1510 = vmatprep.subr.bf16.mxu0 0
        %1511 = vmatpush1.bf16.msra.mxu0 0
        %1512 = vmatprep.subr.bf16.mxu0 0
        %1513 = vmatpush1.bf16.msra.mxu0 0
        %1514 = vmatprep.subr.bf16.mxu0 0
        %1515 = vmatpush1.bf16.msra.mxu0 0
        %1516 = vmatprep.subr.bf16.mxu0 0
        %1517 = vmatpush1.bf16.msra.mxu0 0
        %1518 = vmatprep.subr.bf16.mxu0 0
        %1519 = vmatpush1.bf16.msra.mxu0 0
        %1520 = vmatprep.subr.bf16.mxu0 0
        %1521 = vmatpush1.bf16.msra.mxu0 0
        %1522 = vmatprep.mubr.bf16.mxu0 0
        %1523 = vmatmul.mubr.bf16.gmra.mrb[0].mxu0 %v1443
        %v1524 = vpop.f32.mrb[0].mxu0
        %v1525 = vadd.f32 %v1416, %v1524
        %v1526 = vpop.f32.mrb[0].mxu0
        %v1527 = vpop.f32.mrb[0].mxu0
        %v1528 = vadd.f32 %v1416, %v1527
        %v1529 = vpop.f32.mrb[0].mxu0
        %1530 = vmatprep.mubr.bf16.mxu0 0
        %1531 = vmatmul.mubr.bf16.gmra.mrb[0].mxu0 %v1446
        %v1532 = vpop.f32.mrb[0].mxu0
        %v1533 = vadd.f32 %v1416, %v1532
        %v1534 = vpop.f32.mrb[0].mxu0
        %v1535 = vpop.f32.mrb[0].mxu0
        %v1536 = vadd.f32 %v1416, %v1535
        %v1537 = vpop.f32.mrb[0].mxu0
        %1538 = vmatprep.mubr.bf16.mxu0 0
        %1539 = vmatmul.mubr.bf16.gmra.mrb[0].mxu0 %v1449
        %v1540 = vpop.f32.mrb[0].mxu0
        %v1541 = vadd.f32 %v1416, %v1540
        %v1542 = vpop.f32.mrb[0].mxu0
        %v1543 = vpop.f32.mrb[0].mxu0
        %v1544 = vadd.f32 %v1416, %v1543
        %v1545 = vpop.f32.mrb[0].mxu0
        %1546 = vmatprep.mubr.bf16.mxu0 0
        %1547 = vmatmul.mubr.bf16.gmra.mrb[0].mxu0 %v1452
        %v1548 = vpop.f32.mrb[0].mxu0
        %v1549 = vadd.f32 %v1416, %v1548
        %v1550 = vpop.f32.mrb[0].mxu0
        %v1551 = vpop.f32.mrb[0].mxu0
        %v1552 = vadd.f32 %v1416, %v1551
        %v1553 = vpop.f32.mrb[0].mxu0
        %1554 = vmatprep.mubr.bf16.mxu0 0
        %1555 = vmatmul.mubr.bf16.gmra.mrb[0].mxu0 %v1455
        %v1556 = vpop.f32.mrb[0].mxu0
        %v1557 = vadd.f32 %v1416, %v1556
        %v1558 = vpop.f32.mrb[0].mxu0
        %v1559 = vpop.f32.mrb[0].mxu0
        %v1560 = vadd.f32 %v1416, %v1559
        %v1561 = vpop.f32.mrb[0].mxu0
        %1562 = vmatprep.mubr.bf16.mxu0 0
        %1563 = vmatmul.mubr.bf16.gmra.mrb[0].mxu0 %v1458
        %v1564 = vpop.f32.mrb[0].mxu0
        %v1565 = vadd.f32 %v1416, %v1564
        %v1566 = vpop.f32.mrb[0].mxu0
        %v1567 = vpop.f32.mrb[0].mxu0
        %v1568 = vadd.f32 %v1416, %v1567
        %v1569 = vpop.f32.mrb[0].mxu0
        %1570 = vmatprep.mubr.bf16.mxu0 0
        %1571 = vmatmul.mubr.bf16.gmra.mrb[0].mxu0 %v1461
        %v1572 = vpop.f32.mrb[0].mxu0
        %v1573 = vadd.f32 %v1416, %v1572
        %v1574 = vpop.f32.mrb[0].mxu0
        %v1575 = vpop.f32.mrb[0].mxu0
        %v1576 = vadd.f32 %v1416, %v1575
        %v1577 = vpop.f32.mrb[0].mxu0
        %1578 = vmatprep.mubr.bf16.mxu0 0
        %1579 = vmatmul.mubr.bf16.gmra.mrb[0].mxu0 %v1464
        %v1580 = vpop.f32.mrb[0].mxu0
        %v1581 = vadd.f32 %v1416, %v1580
        %v1582 = vpop.f32.mrb[0].mxu0
        %v1583 = vpop.f32.mrb[0].mxu0
        %v1584 = vadd.f32 %v1416, %v1583
        %v1585 = vpop.f32.mrb[0].mxu0
        %1586 = vmatprep.mubr.bf16.mxu0 0
        %1587 = vmatmul.mubr.bf16.gmra.mrb[0].mxu0 %v1467
        %v1588 = vpop.f32.mrb[0].mxu0
        %v1589 = vadd.f32 %v1416, %v1588
        %v1590 = vpop.f32.mrb[0].mxu0
        %v1591 = vpop.f32.mrb[0].mxu0
        %v1592 = vadd.f32 %v1416, %v1591
        %v1593 = vpop.f32.mrb[0].mxu0
        %1594 = vmatprep.mubr.bf16.mxu0 0
        %1595 = vmatmul.mubr.bf16.gmra.mrb[0].mxu0 %v1470
        %v1596 = vpop.f32.mrb[0].mxu0
        %v1597 = vadd.f32 %v1416, %v1596
        %v1598 = vpop.f32.mrb[0].mxu0
        %v1599 = vpop.f32.mrb[0].mxu0
        %v1600 = vadd.f32 %v1416, %v1599
        %v1601 = vpop.f32.mrb[0].mxu0
        %1602 = vmatprep.mubr.bf16.mxu0 0
        %1603 = vmatmul.mubr.bf16.gmra.mrb[0].mxu0 %v1473
        %v1604 = vpop.f32.mrb[0].mxu0
        %v1605 = vadd.f32 %v1416, %v1604
        %v1606 = vpop.f32.mrb[0].mxu0
        %v1607 = vpop.f32.mrb[0].mxu0
        %v1608 = vadd.f32 %v1416, %v1607
        %v1609 = vpop.f32.mrb[0].mxu0
        %1610 = vmatprep.mubr.bf16.mxu0 0
        %1611 = vmatmul.mubr.bf16.gmra.mrb[0].mxu0 %v1476
        %v1612 = vpop.f32.mrb[0].mxu0
        %v1613 = vadd.f32 %v1416, %v1612
        %v1614 = vpop.f32.mrb[0].mxu0
        %v1615 = vpop.f32.mrb[0].mxu0
        %v1616 = vadd.f32 %v1416, %v1615
        %v1617 = vpop.f32.mrb[0].mxu0
        %1618 = vmatprep.mubr.bf16.mxu0 0
        %1619 = vmatmul.mubr.bf16.gmra.mrb[0].mxu0 %v1479
        %v1620 = vpop.f32.mrb[0].mxu0
        %v1621 = vadd.f32 %v1416, %v1620
        %v1622 = vpop.f32.mrb[0].mxu0
        %v1623 = vpop.f32.mrb[0].mxu0
        %v1624 = vadd.f32 %v1416, %v1623
        %v1625 = vpop.f32.mrb[0].mxu0
        %1626 = vmatprep.mubr.bf16.mxu0 0
        %1627 = vmatmul.mubr.bf16.gmra.mrb[0].mxu0 %v1482
        %v1628 = vpop.f32.mrb[0].mxu0
        %v1629 = vadd.f32 %v1416, %v1628
        %v1630 = vpop.f32.mrb[0].mxu0
        %v1631 = vpop.f32.mrb[0].mxu0
        %v1632 = vadd.f32 %v1416, %v1631
        %v1633 = vpop.f32.mrb[0].mxu0
        %1634 = vmatprep.mubr.bf16.mxu0 0
        %1635 = vmatmul.mubr.bf16.gmra.mrb[0].mxu0 %v1485
        %v1636 = vpop.f32.mrb[0].mxu0
        %v1637 = vadd.f32 %v1416, %v1636
        %v1638 = vpop.f32.mrb[0].mxu0
        %v1639 = vpop.f32.mrb[0].mxu0
        %v1640 = vadd.f32 %v1416, %v1639
        %v1641 = vpop.f32.mrb[0].mxu0
        %1642 = vmatprep.mubr.bf16.mxu0 0
        %1643 = vmatmul.mubr.bf16.gmra.mrb[0].mxu0 %v1488
        %v1644 = vpop.f32.mrb[0].mxu0
        %v1645 = vadd.f32 %v1416, %v1644
        %v1646 = vpop.f32.mrb[0].mxu0
        %v1647 = vpop.f32.mrb[0].mxu0
        %v1648 = vadd.f32 %v1416, %v1647
        %v1649 = vpop.f32.mrb[0].mxu0
        %1650 = vdwg.mxu0
        %v1651 = vmul.f32 %v1525, 0.5
        %v1652 = vmul.f32 %v1528, 0.5
        %v1653 = vmul.f32 %v1533, 0.5
        %v1654 = vmul.f32 %v1536, 0.5
        %v1655 = vmul.f32 %v1541, 0.5
        %v1656 = vmul.f32 %v1544, 0.5
        %v1657 = vmul.f32 %v1549, 0.5
        %v1658 = vmul.f32 %v1552, 0.5
        %v1659 = vmul.f32 %v1557, 0.5
        %v1660 = vmul.f32 %v1560, 0.5
        %v1661 = vmul.f32 %v1565, 0.5
        %v1662 = vmul.f32 %v1568, 0.5
        %v1663 = vmul.f32 %v1573, 0.5
        %v1664 = vmul.f32 %v1576, 0.5
        %v1665 = vmul.f32 %v1581, 0.5
        %v1666 = vmul.f32 %v1584, 0.5
        %v1667 = vmul.f32 %v1589, 0.5
        %v1668 = vmul.f32 %v1592, 0.5
        %v1669 = vmul.f32 %v1597, 0.5
        %v1670 = vmul.f32 %v1600, 0.5
        %v1671 = vmul.f32 %v1605, 0.5
        %v1672 = vmul.f32 %v1608, 0.5
        %v1673 = vmul.f32 %v1613, 0.5
        %v1674 = vmul.f32 %v1616, 0.5
        %v1675 = vmul.f32 %v1621, 0.5
        %v1676 = vmul.f32 %v1624, 0.5
        %v1677 = vmul.f32 %v1629, 0.5
        %v1678 = vmul.f32 %v1632, 0.5
        %v1679 = vmul.f32 %v1637, 0.5
        %v1680 = vmul.f32 %v1640, 0.5
        %v1681 = vmul.f32 %v1645, 0.5
        %v1682 = vmul.f32 %v1648, 0.5
        %v1683 = vmul.f32 %v1525, 0.70710677
        %v1684 = vmul.f32 %v1528, 0.70710677
        %v1685 = vmul.f32 %v1533, 0.70710677
        %v1686 = vmul.f32 %v1536, 0.70710677
        %v1687 = vmul.f32 %v1541, 0.70710677
        %v1688 = vmul.f32 %v1544, 0.70710677
        %v1689 = vmul.f32 %v1549, 0.70710677
        %v1690 = vmul.f32 %v1552, 0.70710677
        %v1691 = vmul.f32 %v1557, 0.70710677
        %v1692 = vmul.f32 %v1560, 0.70710677
        %v1693 = vmul.f32 %v1565, 0.70710677
        %v1694 = vmul.f32 %v1568, 0.70710677
        %v1695 = vmul.f32 %v1573, 0.70710677
        %v1696 = vmul.f32 %v1576, 0.70710677
        %v1697 = vmul.f32 %v1581, 0.70710677
        %v1698 = vmul.f32 %v1584, 0.70710677
        %v1699 = vmul.f32 %v1589, 0.70710677
        %v1700 = vmul.f32 %v1592, 0.70710677
        %v1701 = vmul.f32 %v1597, 0.70710677
        %v1702 = vmul.f32 %v1600, 0.70710677
        %v1703 = vmul.f32 %v1605, 0.70710677
        %v1704 = vmul.f32 %v1608, 0.70710677
        %v1705 = vmul.f32 %v1613, 0.70710677
        %v1706 = vmul.f32 %v1616, 0.70710677
        %v1707 = vmul.f32 %v1621, 0.70710677
        %v1708 = vmul.f32 %v1624, 0.70710677
        %v1709 = vmul.f32 %v1629, 0.70710677
        %v1710 = vmul.f32 %v1632, 0.70710677
        %v1711 = vmul.f32 %v1637, 0.70710677
        %v1712 = vmul.f32 %v1640, 0.70710677
        %v1713 = vmul.f32 %v1645, 0.70710677
        %v1714 = vmul.f32 %v1648, 0.70710677
        %v1715 = verf.f32.pop %v1683
        %v1716 = verf.f32.pop %v1684
        %v1717 = verf.f32.pop %v1685
        %v1718 = verf.f32.pop %v1686
        %v1719 = verf.f32.pop %v1687
        %v1720 = verf.f32.pop %v1688
        %v1721 = verf.f32.pop %v1689
        %v1722 = verf.f32.pop %v1690
        %v1723 = verf.f32.pop %v1691
        %v1724 = verf.f32.pop %v1692
        %v1725 = verf.f32.pop %v1693
        %v1726 = verf.f32.pop %v1694
        %v1727 = verf.f32.pop %v1695
        %v1728 = verf.f32.pop %v1696
        %v1729 = verf.f32.pop %v1697
        %v1730 = verf.f32.pop %v1698
        %v1731 = verf.f32.pop %v1699
        %v1732 = verf.f32.pop %v1700
        %v1733 = verf.f32.pop %v1701
        %v1734 = verf.f32.pop %v1702
        %v1735 = verf.f32.pop %v1703
        %v1736 = verf.f32.pop %v1704
        %v1737 = verf.f32.pop %v1705
        %v1738 = verf.f32.pop %v1706
        %v1739 = verf.f32.pop %v1707
        %v1740 = verf.f32.pop %v1708
        %v1741 = verf.f32.pop %v1709
        %v1742 = verf.f32.pop %v1710
        %v1743 = verf.f32.pop %v1711
        %v1744 = verf.f32.pop %v1712
        %v1745 = verf.f32.pop %v1713
        %v1746 = verf.f32.pop %v1714
        %v1747 = vadd.f32 %v1715, 1.0
        %v1748 = vadd.f32 %v1716, 1.0
        %v1749 = vadd.f32 %v1717, 1.0
        %v1750 = vadd.f32 %v1718, 1.0
        %v1751 = vadd.f32 %v1719, 1.0
        %v1752 = vadd.f32 %v1720, 1.0
        %v1753 = vadd.f32 %v1721, 1.0
        %v1754 = vadd.f32 %v1722, 1.0
        %v1755 = vadd.f32 %v1723, 1.0
        %v1756 = vadd.f32 %v1724, 1.0
        %v1757 = vadd.f32 %v1725, 1.0
        %v1758 = vadd.f32 %v1726, 1.0
        %v1759 = vadd.f32 %v1727, 1.0
        %v1760 = vadd.f32 %v1728, 1.0
        %v1761 = vadd.f32 %v1729, 1.0
        %v1762 = vadd.f32 %v1730, 1.0
        %v1763 = vadd.f32 %v1731, 1.0
        %v1764 = vadd.f32 %v1732, 1.0
        %v1765 = vadd.f32 %v1733, 1.0
        %v1766 = vadd.f32 %v1734, 1.0
        %v1767 = vadd.f32 %v1735, 1.0
        %v1768 = vadd.f32 %v1736, 1.0
        %v1769 = vadd.f32 %v1737, 1.0
        %v1770 = vadd.f32 %v1738, 1.0
        %v1771 = vadd.f32 %v1739, 1.0
        %v1772 = vadd.f32 %v1740, 1.0
        %v1773 = vadd.f32 %v1741, 1.0
        %v1774 = vadd.f32 %v1742, 1.0
        %v1775 = vadd.f32 %v1743, 1.0
        %v1776 = vadd.f32 %v1744, 1.0
        %v1777 = vadd.f32 %v1745, 1.0
        %v1778 = vadd.f32 %v1746, 1.0
        %v1779 = vmul.f32 %v1651, %v1747
        %v1780 = vmul.f32 %v1652, %v1748
        %v1781 = vmul.f32 %v1653, %v1749
        %v1782 = vmul.f32 %v1654, %v1750
        %v1783 = vmul.f32 %v1655, %v1751
        %v1784 = vmul.f32 %v1656, %v1752
        %v1785 = vmul.f32 %v1657, %v1753
        %v1786 = vmul.f32 %v1658, %v1754
        %v1787 = vmul.f32 %v1659, %v1755
        %v1788 = vmul.f32 %v1660, %v1756
        %v1789 = vmul.f32 %v1661, %v1757
        %v1790 = vmul.f32 %v1662, %v1758
        %v1791 = vmul.f32 %v1663, %v1759
        %v1792 = vmul.f32 %v1664, %v1760
        %v1793 = vmul.f32 %v1665, %v1761
        %v1794 = vmul.f32 %v1666, %v1762
        %v1795 = vmul.f32 %v1667, %v1763
        %v1796 = vmul.f32 %v1668, %v1764
        %v1797 = vmul.f32 %v1669, %v1765
        %v1798 = vmul.f32 %v1670, %v1766
        %v1799 = vmul.f32 %v1671, %v1767
        %v1800 = vmul.f32 %v1672, %v1768
        %v1801 = vmul.f32 %v1673, %v1769
        %v1802 = vmul.f32 %v1674, %v1770
        %v1803 = vmul.f32 %v1675, %v1771
        %v1804 = vmul.f32 %v1676, %v1772
        %v1805 = vmul.f32 %v1677, %v1773
        %v1806 = vmul.f32 %v1678, %v1774
        %v1807 = vmul.f32 %v1679, %v1775
        %v1808 = vmul.f32 %v1680, %v1776
        %v1809 = vmul.f32 %v1681, %v1777
        %v1810 = vmul.f32 %v1682, %v1778
        %v1811 = vpack.c.bf16 %v1780, %v1779
        %v1812 = vpack.c.bf16 %v1782, %v1781
        %v1813 = vpack.c.bf16 %v1784, %v1783
        %v1814 = vpack.c.bf16 %v1786, %v1785
        %v1815 = vpack.c.bf16 %v1788, %v1787
        %v1816 = vpack.c.bf16 %v1790, %v1789
        %v1817 = vpack.c.bf16 %v1792, %v1791
        %v1818 = vpack.c.bf16 %v1794, %v1793
        %v1819 = vpack.c.bf16 %v1796, %v1795
        %v1820 = vpack.c.bf16 %v1798, %v1797
        %v1821 = vpack.c.bf16 %v1800, %v1799
        %v1822 = vpack.c.bf16 %v1802, %v1801
        %v1823 = vpack.c.bf16 %v1804, %v1803
        %v1824 = vpack.c.bf16 %v1806, %v1805
        %v1825 = vpack.c.bf16 %v1808, %v1807
        %v1826 = vpack.c.bf16 %v1810, %v1809
        %v1827 = vld [vmem:[#allocation10] sm:$0xff]
        %v1828 = vld [vmem:[#allocation10 + $0x8] sm:$0xff]
        %v1829 = vld [vmem:[#allocation10 + $0x10] sm:$0xff]
        %v1830 = vld [vmem:[#allocation10 + $0x18] sm:$0xff]
        %v1831 = vld [vmem:[#allocation10 + $0x20] sm:$0xff]
        %v1832 = vld [vmem:[#allocation10 + $0x28] sm:$0xff]
        %v1833 = vld [vmem:[#allocation10 + $0x30] sm:$0xff]
        %v1834 = vld [vmem:[#allocation10 + $0x38] sm:$0xff]
        %v1835 = vld [vmem:[#allocation10 + $0x40] sm:$0xff]
        %v1836 = vld [vmem:[#allocation10 + $0x48] sm:$0xff]
        %v1837 = vld [vmem:[#allocation10 + $0x50] sm:$0xff]
        %v1838 = vld [vmem:[#allocation10 + $0x58] sm:$0xff]
        %v1839 = vld [vmem:[#allocation10 + $0x60] sm:$0xff]
        %v1840 = vld [vmem:[#allocation10 + $0x68] sm:$0xff]
        %v1841 = vld [vmem:[#allocation10 + $0x70] sm:$0xff]
        %v1842 = vld [vmem:[#allocation10 + $0x78] sm:$0xff]
        %v1843 = vld [vmem:[%s8] sm:$0x3]
        %v1845 = vlaneseq
        %v1846 = vshrl.u32 %v1845, 7
        %v1847 = vsub.s32 0, %v1846
        %v1848 = vrot.slane %v1843, %v1847
        %v1849 = vlaneseq
        %v1850 = vshrl.u32 %v1849, 7
        %v1851 = vsub.s32 1, %v1850
        %v1852 = vrot.slane %v1843, %v1851
        %v1871 = vunpack.c.l.b16 %v1827
        %v1872 = vunpack.c.h.b16 %v1827
        %v1873 = vunpack.c.l.b16 %v1828
        %v1874 = vunpack.c.h.b16 %v1828
        %v1875 = vunpack.c.l.b16 %v1829
        %v1876 = vunpack.c.h.b16 %v1829
        %v1877 = vunpack.c.l.b16 %v1830
        %v1878 = vunpack.c.h.b16 %v1830
        %v1879 = vunpack.c.l.b16 %v1831
        %v1880 = vunpack.c.h.b16 %v1831
        %v1881 = vunpack.c.l.b16 %v1832
        %v1882 = vunpack.c.h.b16 %v1832
        %v1883 = vunpack.c.l.b16 %v1833
        %v1884 = vunpack.c.h.b16 %v1833
        %v1885 = vunpack.c.l.b16 %v1834
        %v1886 = vunpack.c.h.b16 %v1834
        %v1887 = vunpack.c.l.b16 %v1835
        %v1888 = vunpack.c.h.b16 %v1835
        %v1889 = vunpack.c.l.b16 %v1836
        %v1890 = vunpack.c.h.b16 %v1836
        %v1891 = vunpack.c.l.b16 %v1837
        %v1892 = vunpack.c.h.b16 %v1837
        %v1893 = vunpack.c.l.b16 %v1838
        %v1894 = vunpack.c.h.b16 %v1838
        %v1895 = vunpack.c.l.b16 %v1839
        %v1896 = vunpack.c.h.b16 %v1839
        %v1897 = vunpack.c.l.b16 %v1840
        %v1898 = vunpack.c.h.b16 %v1840
        %v1899 = vunpack.c.l.b16 %v1841
        %v1900 = vunpack.c.h.b16 %v1841
        %v1901 = vunpack.c.l.b16 %v1842
        %v1902 = vunpack.c.h.b16 %v1842
        %v1903 = vpack.c.b16 %v1873, %v1871
        %v1904 = vpack.c.b16 %v1874, %v1872
        %v1905 = vpack.c.b16 %v1877, %v1875
        %v1906 = vpack.c.b16 %v1878, %v1876
        %v1907 = vpack.c.b16 %v1881, %v1879
        %v1908 = vpack.c.b16 %v1882, %v1880
        %v1909 = vpack.c.b16 %v1885, %v1883
        %v1910 = vpack.c.b16 %v1886, %v1884
        %v1911 = vpack.c.b16 %v1889, %v1887
        %v1912 = vpack.c.b16 %v1890, %v1888
        %v1913 = vpack.c.b16 %v1893, %v1891
        %v1914 = vpack.c.b16 %v1894, %v1892
        %v1915 = vpack.c.b16 %v1897, %v1895
        %v1916 = vpack.c.b16 %v1898, %v1896
        %v1917 = vpack.c.b16 %v1901, %v1899
        %v1918 = vpack.c.b16 %v1902, %v1900
        %1935 = vmatprep.subr.bf16.mxu0 %v1904
        %1936 = vmatpush1.bf16.msra.mxu0 %v1903
        %1937 = vmatprep.subr.bf16.mxu0 %v1906
        %1938 = vmatpush1.bf16.msra.mxu0 %v1905
        %1939 = vmatprep.subr.bf16.mxu0 %v1908
        %1940 = vmatpush1.bf16.msra.mxu0 %v1907
        %1941 = vmatprep.subr.bf16.mxu0 %v1910
        %1942 = vmatpush1.bf16.msra.mxu0 %v1909
        %1943 = vmatprep.subr.bf16.mxu0 %v1912
        %1944 = vmatpush1.bf16.msra.mxu0 %v1911
        %1945 = vmatprep.subr.bf16.mxu0 %v1914
        %1946 = vmatpush1.bf16.msra.mxu0 %v1913
        %1947 = vmatprep.subr.bf16.mxu0 %v1916
        %1948 = vmatpush1.bf16.msra.mxu0 %v1915
        %1949 = vmatprep.subr.bf16.mxu0 %v1918
        %1950 = vmatpush1.bf16.msra.mxu0 %v1917
        %1951 = vmatprep.subr.bf16.mxu0 0
        %1952 = vmatpush1.bf16.msra.mxu0 0
        %1953 = vmatprep.subr.bf16.mxu0 0
        %1954 = vmatpush1.bf16.msra.mxu0 0
        %1955 = vmatprep.subr.bf16.mxu0 0
        %1956 = vmatpush1.bf16.msra.mxu0 0
        %1957 = vmatprep.subr.bf16.mxu0 0
        %1958 = vmatpush1.bf16.msra.mxu0 0
        %1959 = vmatprep.subr.bf16.mxu0 0
        %1960 = vmatpush1.bf16.msra.mxu0 0
        %1961 = vmatprep.subr.bf16.mxu0 0
        %1962 = vmatpush1.bf16.msra.mxu0 0
        %1963 = vmatprep.subr.bf16.mxu0 0
        %1964 = vmatpush1.bf16.msra.mxu0 0
        %1965 = vmatprep.subr.bf16.mxu0 0
        %1966 = vmatpush1.bf16.msra.mxu0 0
        %1967 = vmatprep.mubr.bf16.mxu0 0
        %1968 = vmatmul.mubr.bf16.gmra.mrb[0].mxu0 %v1811
        %v1969 = vpop.f32.mrb[0].mxu0
        %v1970 = vadd.f32 %v1848, %v1969
        %v1971 = vpop.f32.mrb[0].mxu0
        %v1972 = vadd.f32 %v1852, %v1971
        %v1973 = vpop.f32.mrb[0].mxu0
        %v1974 = vadd.f32 %v1848, %v1973
        %v1975 = vpop.f32.mrb[0].mxu0
        %v1976 = vadd.f32 %v1852, %v1975
        %1977 = vmatprep.mubr.bf16.mxu0 0
        %1978 = vmatmul.mubr.bf16.gmra.mrb[0].mxu0 %v1812
        %v1979 = vpop.f32.mrb[0].mxu0
        %v1980 = vadd.f32 %v1848, %v1979
        %v1981 = vpop.f32.mrb[0].mxu0
        %v1982 = vadd.f32 %v1852, %v1981
        %v1983 = vpop.f32.mrb[0].mxu0
        %v1984 = vadd.f32 %v1848, %v1983
        %v1985 = vpop.f32.mrb[0].mxu0
        %v1986 = vadd.f32 %v1852, %v1985
        %1987 = vmatprep.mubr.bf16.mxu0 0
        %1988 = vmatmul.mubr.bf16.gmra.mrb[0].mxu0 %v1813
        %v1989 = vpop.f32.mrb[0].mxu0
        %v1990 = vadd.f32 %v1848, %v1989
        %v1991 = vpop.f32.mrb[0].mxu0
        %v1992 = vadd.f32 %v1852, %v1991
        %v1993 = vpop.f32.mrb[0].mxu0
        %v1994 = vadd.f32 %v1848, %v1993
        %v1995 = vpop.f32.mrb[0].mxu0
        %v1996 = vadd.f32 %v1852, %v1995
        %1997 = vmatprep.mubr.bf16.mxu0 0
        %1998 = vmatmul.mubr.bf16.gmra.mrb[0].mxu0 %v1814
        %v1999 = vpop.f32.mrb[0].mxu0
        %v2000 = vadd.f32 %v1848, %v1999
        %v2001 = vpop.f32.mrb[0].mxu0
        %v2002 = vadd.f32 %v1852, %v2001
        %v2003 = vpop.f32.mrb[0].mxu0
        %v2004 = vadd.f32 %v1848, %v2003
        %v2005 = vpop.f32.mrb[0].mxu0
        %v2006 = vadd.f32 %v1852, %v2005
        %2007 = vmatprep.mubr.bf16.mxu0 0
        %2008 = vmatmul.mubr.bf16.gmra.mrb[0].mxu0 %v1815
        %v2009 = vpop.f32.mrb[0].mxu0
        %v2010 = vadd.f32 %v1848, %v2009
        %v2011 = vpop.f32.mrb[0].mxu0
        %v2012 = vadd.f32 %v1852, %v2011
        %v2013 = vpop.f32.mrb[0].mxu0
        %v2014 = vadd.f32 %v1848, %v2013
        %v2015 = vpop.f32.mrb[0].mxu0
        %v2016 = vadd.f32 %v1852, %v2015
        %2017 = vmatprep.mubr.bf16.mxu0 0
        %2018 = vmatmul.mubr.bf16.gmra.mrb[0].mxu0 %v1816
        %v2019 = vpop.f32.mrb[0].mxu0
        %v2020 = vadd.f32 %v1848, %v2019
        %v2021 = vpop.f32.mrb[0].mxu0
        %v2022 = vadd.f32 %v1852, %v2021
        %v2023 = vpop.f32.mrb[0].mxu0
        %v2024 = vadd.f32 %v1848, %v2023
        %v2025 = vpop.f32.mrb[0].mxu0
        %v2026 = vadd.f32 %v1852, %v2025
        %2027 = vmatprep.mubr.bf16.mxu0 0
        %2028 = vmatmul.mubr.bf16.gmra.mrb[0].mxu0 %v1817
        %v2029 = vpop.f32.mrb[0].mxu0
        %v2030 = vadd.f32 %v1848, %v2029
        %v2031 = vpop.f32.mrb[0].mxu0
        %v2032 = vadd.f32 %v1852, %v2031
        %v2033 = vpop.f32.mrb[0].mxu0
        %v2034 = vadd.f32 %v1848, %v2033
        %v2035 = vpop.f32.mrb[0].mxu0
        %v2036 = vadd.f32 %v1852, %v2035
        %2037 = vmatprep.mubr.bf16.mxu0 0
        %2038 = vmatmul.mubr.bf16.gmra.mrb[0].mxu0 %v1818
        %v2039 = vpop.f32.mrb[0].mxu0
        %v2040 = vadd.f32 %v1848, %v2039
        %v2041 = vpop.f32.mrb[0].mxu0
        %v2042 = vadd.f32 %v1852, %v2041
        %v2043 = vpop.f32.mrb[0].mxu0
        %v2044 = vadd.f32 %v1848, %v2043
        %v2045 = vpop.f32.mrb[0].mxu0
        %v2046 = vadd.f32 %v1852, %v2045
        %2047 = vmatprep.mubr.bf16.mxu0 0
        %2048 = vmatmul.mubr.bf16.gmra.mrb[0].mxu0 %v1819
        %v2049 = vpop.f32.mrb[0].mxu0
        %v2050 = vadd.f32 %v1848, %v2049
        %v2051 = vpop.f32.mrb[0].mxu0
        %v2052 = vadd.f32 %v1852, %v2051
        %v2053 = vpop.f32.mrb[0].mxu0
        %v2054 = vadd.f32 %v1848, %v2053
        %v2055 = vpop.f32.mrb[0].mxu0
        %v2056 = vadd.f32 %v1852, %v2055
        %2057 = vmatprep.mubr.bf16.mxu0 0
        %2058 = vmatmul.mubr.bf16.gmra.mrb[0].mxu0 %v1820
        %v2059 = vpop.f32.mrb[0].mxu0
        %v2060 = vadd.f32 %v1848, %v2059
        %v2061 = vpop.f32.mrb[0].mxu0
        %v2062 = vadd.f32 %v1852, %v2061
        %v2063 = vpop.f32.mrb[0].mxu0
        %v2064 = vadd.f32 %v1848, %v2063
        %v2065 = vpop.f32.mrb[0].mxu0
        %v2066 = vadd.f32 %v1852, %v2065
        %2067 = vmatprep.mubr.bf16.mxu0 0
        %2068 = vmatmul.mubr.bf16.gmra.mrb[0].mxu0 %v1821
        %v2069 = vpop.f32.mrb[0].mxu0
        %v2070 = vadd.f32 %v1848, %v2069
        %v2071 = vpop.f32.mrb[0].mxu0
        %v2072 = vadd.f32 %v1852, %v2071
        %v2073 = vpop.f32.mrb[0].mxu0
        %v2074 = vadd.f32 %v1848, %v2073
        %v2075 = vpop.f32.mrb[0].mxu0
        %v2076 = vadd.f32 %v1852, %v2075
        %2077 = vmatprep.mubr.bf16.mxu0 0
        %2078 = vmatmul.mubr.bf16.gmra.mrb[0].mxu0 %v1822
        %v2079 = vpop.f32.mrb[0].mxu0
        %v2080 = vadd.f32 %v1848, %v2079
        %v2081 = vpop.f32.mrb[0].mxu0
        %v2082 = vadd.f32 %v1852, %v2081
        %v2083 = vpop.f32.mrb[0].mxu0
        %v2084 = vadd.f32 %v1848, %v2083
        %v2085 = vpop.f32.mrb[0].mxu0
        %v2086 = vadd.f32 %v1852, %v2085
        %2087 = vmatprep.mubr.bf16.mxu0 0
        %2088 = vmatmul.mubr.bf16.gmra.mrb[0].mxu0 %v1823
        %v2089 = vpop.f32.mrb[0].mxu0
        %v2090 = vadd.f32 %v1848, %v2089
        %v2091 = vpop.f32.mrb[0].mxu0
        %v2092 = vadd.f32 %v1852, %v2091
        %v2093 = vpop.f32.mrb[0].mxu0
        %v2094 = vadd.f32 %v1848, %v2093
        %v2095 = vpop.f32.mrb[0].mxu0
        %v2096 = vadd.f32 %v1852, %v2095
        %2097 = vmatprep.mubr.bf16.mxu0 0
        %2098 = vmatmul.mubr.bf16.gmra.mrb[0].mxu0 %v1824
        %v2099 = vpop.f32.mrb[0].mxu0
        %v2100 = vadd.f32 %v1848, %v2099
        %v2101 = vpop.f32.mrb[0].mxu0
        %v2102 = vadd.f32 %v1852, %v2101
        %v2103 = vpop.f32.mrb[0].mxu0
        %v2104 = vadd.f32 %v1848, %v2103
        %v2105 = vpop.f32.mrb[0].mxu0
        %v2106 = vadd.f32 %v1852, %v2105
        %2107 = vmatprep.mubr.bf16.mxu0 0
        %2108 = vmatmul.mubr.bf16.gmra.mrb[0].mxu0 %v1825
        %v2109 = vpop.f32.mrb[0].mxu0
        %v2110 = vadd.f32 %v1848, %v2109
        %v2111 = vpop.f32.mrb[0].mxu0
        %v2112 = vadd.f32 %v1852, %v2111
        %v2113 = vpop.f32.mrb[0].mxu0
        %v2114 = vadd.f32 %v1848, %v2113
        %v2115 = vpop.f32.mrb[0].mxu0
        %v2116 = vadd.f32 %v1852, %v2115
        %2117 = vmatprep.mubr.bf16.mxu0 0
        %2118 = vmatmul.mubr.bf16.gmra.mrb[0].mxu0 %v1826
        %v2119 = vpop.f32.mrb[0].mxu0
        %v2120 = vadd.f32 %v1848, %v2119
        %v2121 = vpop.f32.mrb[0].mxu0
        %v2122 = vadd.f32 %v1852, %v2121
        %v2123 = vpop.f32.mrb[0].mxu0
        %v2124 = vadd.f32 %v1848, %v2123
        %v2125 = vpop.f32.mrb[0].mxu0
        %v2126 = vadd.f32 %v1852, %v2125
        %2127 = vdwg.mxu0
        %v2128 = vmax.f32 %v1970, %v1980
        %v2129 = vmax.f32 %v1974, %v1984
        %v2130 = vmax.f32 %v2128, %v1990
        %v2131 = vmax.f32 %v2129, %v1994
        %v2132 = vmax.f32 %v2130, %v2000
        %v2133 = vmax.f32 %v2131, %v2004
        %v2134 = vmax.f32 %v2132, %v2010
        %v2135 = vmax.f32 %v2133, %v2014
        %v2136 = vmax.f32 %v2134, %v2020
        %v2137 = vmax.f32 %v2135, %v2024
        %v2138 = vmax.f32 %v2136, %v2030
        %v2139 = vmax.f32 %v2137, %v2034
        %v2140 = vmax.f32 %v2138, %v2040
        %v2141 = vmax.f32 %v2139, %v2044
        %v2142 = vmax.f32 %v2140, %v2050
        %v2143 = vmax.f32 %v2141, %v2054
        %v2144 = vmax.f32 %v2142, %v2060
        %v2145 = vmax.f32 %v2143, %v2064
        %v2146 = vmax.f32 %v2144, %v2070
        %v2147 = vmax.f32 %v2145, %v2074
        %v2148 = vmax.f32 %v2146, %v2080
        %v2149 = vmax.f32 %v2147, %v2084
        %v2150 = vmax.f32 %v2148, %v2090
        %v2151 = vmax.f32 %v2149, %v2094
        %v2152 = vmax.f32 %v2150, %v2100
        %v2153 = vmax.f32 %v2151, %v2104
        %v2154 = vmax.f32 %v2152, %v2110
        %v2155 = vmax.f32 %v2153, %v2114
        %v2156 = vmax.f32 %v2154, %v2120
        %v2157 = vmax.f32 %v2155, %v2124
        %v2158 = vmax.f32 %v2156, %v2157
        %v2159 = vrot.slane %v2158, 4
        %v2160 = vmax.f32 %v2158, %v2159
        %v2161 = vrot.slane %v2160, 2
        %v2162 = vmax.f32 %v2160, %v2161
        %v2163 = vrot.slane %v2162, 1
        %v2164 = vmax.f32 %v2162, %v2163
        %v2165 = vmax.f32 %v1972, %v1982
        %v2166 = vmax.f32 %v1976, %v1986
        %v2167 = vmax.f32 %v2165, %v1992
        %v2168 = vmax.f32 %v2166, %v1996
        %v2169 = vmax.f32 %v2167, %v2002
        %v2170 = vmax.f32 %v2168, %v2006
        %v2171 = vmax.f32 %v2169, %v2012
        %v2172 = vmax.f32 %v2170, %v2016
        %v2173 = vmax.f32 %v2171, %v2022
        %v2174 = vmax.f32 %v2172, %v2026
        %v2175 = vmax.f32 %v2173, %v2032
        %v2176 = vmax.f32 %v2174, %v2036
        %v2177 = vmax.f32 %v2175, %v2042
        %v2178 = vmax.f32 %v2176, %v2046
        %v2179 = vmax.f32 %v2177, %v2052
        %v2180 = vmax.f32 %v2178, %v2056
        %v2181 = vmax.f32 %v2179, %v2062
        %v2182 = vmax.f32 %v2180, %v2066
        %v2183 = vmax.f32 %v2181, %v2072
        %v2184 = vmax.f32 %v2182, %v2076
        %v2185 = vmax.f32 %v2183, %v2082
        %v2186 = vmax.f32 %v2184, %v2086
        %v2187 = vmax.f32 %v2185, %v2092
        %v2188 = vmax.f32 %v2186, %v2096
        %v2189 = vmax.f32 %v2187, %v2102
        %v2190 = vmax.f32 %v2188, %v2106
        %v2191 = vmax.f32 %v2189, %v2112
        %v2192 = vmax.f32 %v2190, %v2116
        %v2193 = vmax.f32 %v2191, %v2122
        %v2194 = vmax.f32 %v2192, %v2126
        %v2195 = vmax.f32 %v2193, %v2194
        %v2196 = vrot.slane %v2195, 4
        %v2197 = vmax.f32 %v2195, %v2196
        %v2198 = vrot.slane %v2197, 2
        %v2199 = vmax.f32 %v2197, %v2198
        %v2200 = vrot.slane %v2199, 1
        %v2201 = vmax.f32 %v2199, %v2200
        %v2204 = vcombine.low %v2164, %v2201
        %v2206 = vunpack.c.l.s4 1966171168
        %v2207 = vunpack.c.0.s8 %v2206
        %v2208 = vlaneseq
        %v2209 = vshrl.u32 %v2208, 7
        %v2210 = vsub.s32 %v2207, %v2209
        %v2211 = vrot.slane %v2204, %v2210
        %v2213 = vunpack.c.l.s4 1966171168
        %v2214 = vunpack.c.0.s8 %v2213
        %v2215 = vlaneseq
        %v2216 = vshrl.u32 %v2215, 7
        %v2217 = vsub.s32 %v2214, %v2216
        %v2218 = vrot.slane %v2211, %v2217
        %v2220 = vlaneseq
        %vm2221 = vcmp.ge.s32.totalorder %v2220, 0
        %vm2222 = vcmp.lt.s32.totalorder %v2220, 256
        %vm2223 = vmand %vm2221, %vm2222
        %2224 = vst.msk [vmem:[%s404] sm:$0x3] %vm2223, %v2218
        %s2225 = sand.u32 %s230, 1
        %s2226 = scalar_lea.sflag [#allocation4], %s2225
        %s2227 = sand.u32 %s230, 1
        %s2228 = smul.addr %s2227, 2
        %s2229 = scalar_lea.vmem [#allocation11], %s2228
        // Predicated region
        $region77: #{tpu_custom_call.1} parent=55 // pred_check
          %p2230 = pneg %p240
        $region78: #{tpu_custom_call.1} parent=55 // pred_check_branch
          %2232 = sbr.rel (%p2230) target = $region80
        $region79: #{tpu_custom_call.1} parent=55 // pred_region
          %s2234 = ssub.s32 32, 32
          %2235 = vsyncadd %s2226, %s2234
          %s2236 = smul.addr %s28, 2
          %s2237 = smul.addr %s2236, 16
          %s2238 = scalar_lea.hbm %s9, %s2237
          %s2240 = sshll.u32 %s2229, 4
          %s2241 = int_to_ptr.vmem [resolvable:$true] %s2240
          %2243 = dma.vmem_to_hbm [thread:$0]  %s2241, 32, %s2238, %s2226
        $region80: #{tpu_custom_call.1} parent=55 // pred_fallthru
          _
      $region56: #{tpu_custom_call.1} parent=5 // pred_fallthru
        _
      %p2244 = scmp.le.s32.totalorder 2, %s23
      // Predicated region
      $region81: #{tpu_custom_call.1} parent=5 // pred_check
        %p2245 = pneg %p2244
      $region82: #{tpu_custom_call.1} parent=5 // pred_check_branch
        %2247 = sbr.rel (%p2245) target = $region84
      $region83: #{tpu_custom_call.1} parent=5 // pred_region
        %s2248 = ssub.s32 %s23, 2
        // Predicated region
        $region85: #{tpu_custom_call.1} parent=83 // pred_check
          %p2249 = pneg %p246
        $region86: #{tpu_custom_call.1} parent=83 // pred_check_branch
          %2251 = sbr.rel (%p2249) target = $region88
        $region87: #{tpu_custom_call.1} parent=83 // pred_region
          %s2252 = sand.u32 %s231, 1
          %s2253 = scalar_lea.sflag [#allocation4], %s2252
          %s2254 = sand.u32 %s231, 1
          %s2255 = smul.addr %s2254, 2
          %s2256 = scalar_lea.vmem [#allocation11], %s2255
          %2257 = dma.done %s2253, 32
        $region88: #{tpu_custom_call.1} parent=83 // pred_fallthru
          _
      $region84: #{tpu_custom_call.1} parent=5 // pred_fallthru
        _
    $region6: #{tpu_custom_call.1} parent=1 // loop_footer
      %s27 = sadd.s32 1, %s23
    $region7: #{tpu_custom_call.1} parent=1 // loop_footer_branch
      %22 = sbr.rel target = $region3
    $region8: #{tpu_custom_call.1} parent=1 // loop_exit
      _
    %2258 = vsyncpa [#allocation3], 1
    %s2259 = scalar_lea.sflag [#allocation3], 1
    %2260 = vsyncpa %s2259, 1
    %2261 = vsyncpa [#allocation6], 1
    %2262 = vsyncpa [#allocation9], 1
    %2263 = vsyncpa [#allocation4], 1
    %s2264 = scalar_lea.sflag [#allocation4], 1
    %2265 = vsyncpa %s2264, 1

</llo_original>
